<compile_context>
chip_gen: v5e
topology: v5e:2x2
jax: 0.10.0
libtpu: 0.0.40
codegen_flags: <defaults>
</compile_context>

<pallas_src>
import jax
import jax.numpy as jnp
from jax import lax
from jax.experimental import pallas as pl
from jax.experimental.pallas import tpu as pltpu

KERNEL_SIZES = [3, 5, 7, 11]
K_MAX = max(KERNEL_SIZES)      # 11
PAD = K_MAX // 2               # 5


def _round_up(x, m):
    return ((x + m - 1) // m) * m


def _conv_kernel(x_hbm, w_ref, b_ref, o_ref, x_buf, sem):
    """One (batch, row-tile) grid step.

    x_hbm: (N, rows_total, lane_in)   padded input, left in HBM (pl.ANY)
    w_ref: (n_slots, k_dim, lane_out) banded weight (constant block, single-buffered)
    b_ref: (1, lane_out)              f32 bias tiled over W
    o_ref: (1, tile_h, lane_out)      f32 output row tile (doubles as the accumulator)
    x_buf: (2, r_buf, lane_in)        VMEM double buffer for the halo'd row window
    sem  : DMA semaphores (2,)
    """
    n = pl.program_id(0)
    t = pl.program_id(1)
    n_t = pl.num_programs(1)
    tile_h = o_ref.shape[1]
    r_buf = x_buf.shape[1]
    lane_in = x_buf.shape[2]
    n_slots = w_ref.shape[0]
    paired = w_ref.shape[1] == 2 * lane_in

    def dma(tile_idx, slot):
        row0 = pl.multiple_of(tile_idx * tile_h, 8)
        return pltpu.make_async_copy(
            x_hbm.at[n, pl.ds(row0, r_buf), :], x_buf.at[slot], sem.at[slot])

    slot = lax.rem(t, 2)

    @pl.when(t == 0)
    def _():
        dma(t, slot).start()            # pipeline prime: first row tile of this batch

    dma(t, slot).wait()

    @pl.when(t + 1 < n_t)
    def _():
        dma(t + 1, 1 - slot).start()    # prefetch next row tile while computing this one

    x_tile = x_buf[slot]                # (r_buf, lane_in) resident value

    def operand(i):
        # TODO(synk): pltpu.roll-based slab generation (XLU) instead of unaligned slices.
        if paired:
            return jnp.concatenate(
                [x_tile[2 * i:2 * i + tile_h, :],
                 x_tile[2 * i + 1:2 * i + 1 + tile_h, :]], axis=1)
        return x_tile[i:i + tile_h, :]

    # Slot 0 initializes the f32 accumulator (the output block itself) from the bias.
    o_ref[0] = b_ref[...] + jnp.dot(operand(0), w_ref[0],
                                    preferred_element_type=jnp.float32)
    for i in range(1, n_slots):
        o_ref[0] += jnp.dot(operand(i), w_ref[i],
                            preferred_element_type=jnp.float32)


def multiscale_conv_pallas(x_nchw, weights, biases, *, tile_h=None,
                           compute_dtype=jnp.bfloat16, kh_pair=True):
    """x_nchw: (N, Cin, H, W). weights: list of (Cout, Cin, k, k). biases: list of (Cout,)."""
    N, Cin, H, W = x_nchw.shape
    Cout = weights[0].shape[0]

    # ---- fuse the 4 kernels into one 11x11 kernel (f32 sum, cast last) ----
    w_comb = jnp.zeros((K_MAX, K_MAX, Cin, Cout), jnp.float32)
    for wk in weights:
        k = wk.shape[-1]
        off = (K_MAX - k) // 2
        w_comb = w_comb.at[off:off + k, off:off + k].add(
            jnp.transpose(wk, (2, 3, 1, 0)).astype(jnp.float32))
    b_comb = sum(b.astype(jnp.float32) for b in biases)            # (Cout,)

    # ---- lane-dense geometry: both lane axes padded to multiples of 128 ----
    Wp = W + 2 * PAD
    lane_in = _round_up(Wp * Cin, 128)
    lane_out_valid = W * Cout
    lane_out = _round_up(lane_out_valid, 128)

    in_item = jnp.dtype(compute_dtype).itemsize
    n_slots = 6 if kh_pair else K_MAX           # kh pairs -> K=2*lane_in contraction
    k_dim = 2 * lane_in if kh_pair else lane_in

    # ---- row tile size: as many output rows as fit a v7x-safe scoped-VMEM budget ----
    h8 = _round_up(H, 8)
    tile_h = h8 if tile_h is None else min(_round_up(tile_h, 8), h8)
    tile_h = min(tile_h, 512)

    def vmem_est(th):
        rb = _round_up(th + 2 * PAD, 8)
        return (2 * n_slots * k_dim * lane_out * in_item   # weight (worst case: 2 buffers)
                + 2 * lane_out * 4                          # bias
                + 2 * rb * lane_in * in_item                # input double buffer (scratch)
                + 2 * th * lane_out * 4)                    # output double buffer

    budget = 24 * 2 ** 20                                   # headroom under 32 MiB scoped
    while tile_h > 8 and vmem_est(tile_h) > budget:
        tile_h -= 8
    n_t = -(-H // tile_h)
    r_buf = _round_up(tile_h + 2 * PAD, 8)
    rows_total = n_t * tile_h + (r_buf - tile_h)
    vmem_limit = int(min(max(1.5 * vmem_est(tile_h), 32 * 2 ** 20), 60 * 2 ** 20))

    # ---- banded ("Toeplitz") weight: folds kw and Cin into the contraction ----
    p = jnp.arange(lane_in)
    q = jnp.arange(lane_out)
    wp_idx, ci_idx = p // Cin, p % Cin
    w_idx, co_idx = q // Cout, q % Cout
    kw = wp_idx[:, None] - w_idx[None, :]                    # (lane_in, lane_out)
    valid = ((kw >= 0) & (kw < K_MAX)
             & (p[:, None] < Wp * Cin) & (q[None, :] < lane_out_valid))
    kw_c = jnp.where(valid, kw, 0)
    w_band = w_comb[:, kw_c, ci_idx[:, None], co_idx[None, :]]   # (11, lane_in, lane_out)
    w_band = jnp.where(valid[None], w_band, 0.0)
    if kh_pair:
        w_band = jnp.concatenate(
            [w_band, jnp.zeros((1, lane_in, lane_out), w_band.dtype)], axis=0)
        w_band = w_band.reshape(n_slots, k_dim, lane_out)        # pairs (0,1),(2,3),...
    w_band = w_band.astype(compute_dtype)

    b_row = jnp.pad(jnp.tile(b_comb, W),
                    (0, lane_out - lane_out_valid)).reshape(1, lane_out)  # f32

    # ---- single padded input array, left in HBM (no halo duplication / stacking) ----
    x_nhwc = jnp.transpose(x_nchw, (0, 2, 3, 1)).astype(compute_dtype)
    x_rows = jnp.pad(x_nhwc, ((0, 0), (PAD, rows_total - PAD - H), (PAD, PAD), (0, 0)))
    x_rows = x_rows.reshape(N, rows_total, Wp * Cin)
    x_rows = jnp.pad(x_rows, ((0, 0), (0, 0), (0, lane_in - Wp * Cin)))

    def _build_call(const_buffering):
        extra = {}
        if const_buffering is not None:
            extra = dict(pipeline_mode=pl.Buffered(const_buffering))
        grid_spec = pltpu.PrefetchScalarGridSpec(
            num_scalar_prefetch=0,
            grid=(N, n_t),
            in_specs=[
                pl.BlockSpec(memory_space=pl.ANY),                       # raw HBM input
                pl.BlockSpec((n_slots, k_dim, lane_out),
                             lambda n, t: (0, 0, 0), **extra),           # constant weight
                pl.BlockSpec((1, lane_out), lambda n, t: (0, 0), **extra),
            ],
            out_specs=pl.BlockSpec((1, tile_h, lane_out), lambda n, t: (n, t, 0)),
            scratch_shapes=[
                pltpu.VMEM((2, r_buf, lane_in), compute_dtype),
                pltpu.SemaphoreType.DMA((2,)),
            ],
        )
        return pl.pallas_call(
            _conv_kernel,
            out_shape=jax.ShapeDtypeStruct((N, n_t * tile_h, lane_out), jnp.float32),
            grid_spec=grid_spec,
            compiler_params=pltpu.CompilerParams(
                dimension_semantics=("parallel", "arbitrary"),
                vmem_limit_bytes=vmem_limit),
        )

    args = (x_rows, w_band, b_row)
    try:
        out = _build_call(const_buffering=1)(*args)
    except Exception:  # pl.Buffered(1)/pipeline_mode unsupported -> default double buffering
        out = _build_call(const_buffering=None)(*args)

    out = out[:, :H, :lane_out_valid].reshape(N, H, W, Cout)
    return jnp.transpose(out, (0, 3, 1, 2))


def _reference(x_nchw, weights, biases):
    """Pure-JAX reference matching the PyTorch module (sum of 4 same-padded convs)."""
    out = None
    for w_k, b_k in zip(weights, biases):
        k = w_k.shape[-1]
        y = jax.lax.conv_general_dilated(
            x_nchw, w_k, window_strides=(1, 1),
            padding=[(k // 2, k // 2), (k // 2, k // 2)],
            dimension_numbers=("NCHW", "OIHW", "NCHW"))
        y = y + b_k[None, :, None, None]
        out = y if out is None else out + y
    return out


if __name__ == "__main__":
    key = jax.random.PRNGKey(0)
    N, Cin, Cout, H, W = 2, 4, 8, 16, 16

    keys = jax.random.split(key, 1 + 2 * len(KERNEL_SIZES))
    x = jax.random.normal(keys[0], (N, Cin, H, W), jnp.float32)

    weights, biases = [], []
    for i, k in enumerate(KERNEL_SIZES):
        w = jax.random.normal(keys[1 + 2 * i], (Cout, Cin, k, k), jnp.float32) * 0.1
        b = jax.random.normal(keys[2 + 2 * i], (Cout,), jnp.float32) * 0.1
        weights.append(w)
        biases.append(b)

    ref = _reference(x, weights, biases)

    # f32 operand path (tolerance covers MXU default-precision behaviour for f32 dots).
    out_f32 = jax.block_until_ready(
        multiscale_conv_pallas(x, weights, biases, compute_dtype=jnp.float32))
    assert out_f32.shape == (N, Cout, H, W)
    assert jnp.allclose(out_f32, ref, atol=5e-2, rtol=5e-2), "f32 kernel mismatch vs reference"

    # Default path: bf16 operands, f32 MXU accumulation (v5e/v6e/v7x native).
    out_bf16 = jax.block_until_ready(multiscale_conv_pallas(x, weights, biases))
    assert jnp.allclose(out_bf16, ref, atol=2e-1, rtol=5e-2), "bf16 kernel mismatch vs reference"

    # Exercise the multi-row-tile manual-DMA prefetch pipeline and the unpaired-kh path.
    out_tiled = jax.block_until_ready(
        multiscale_conv_pallas(x, weights, biases, tile_h=8, kh_pair=False))
    assert jnp.allclose(out_tiled, ref, atol=2e-1, rtol=5e-2), "tiled kernel mismatch vs reference"

    print("KERNEL_OK")
</pallas_src>

<mosaic_0001>
module attributes {stable_mosaic.version = 11 : i64} {
  func.func @_conv_kernel(%arg0: i32, %arg1: i32, %arg2: memref<2x32x128xf32, #tpu.memory_space<any>>, %arg3: memref<6x256x128xf32, #tpu.memory_space<vmem>>, %arg4: memref<1x128xf32, #tpu.memory_space<vmem>>, %arg5: memref<1x16x128xf32, #tpu.memory_space<vmem>>, %arg6: memref<2x32x128xf32, #tpu.memory_space<vmem>>, %arg7: memref<2x!tpu.dma_semaphore, #tpu.memory_space<semaphore_mem>>) attributes {dimension_semantics = [#tpu.dimension_semantics<parallel>, #tpu.dimension_semantics<arbitrary>], iteration_bounds = array<i64: 2, 1>, scalar_prefetch = 0 : i64, scratch_operands = 2 : i64, tpu.core_type = #tpu.core_type<tc>, window_params = [{}, {pipeline_mode = #tpu.pipeline_mode<synchronous>, transform_indices = @transform_1, window_bounds = array<i64: 6, 256, 128>}, {pipeline_mode = #tpu.pipeline_mode<synchronous>, transform_indices = @transform_2, window_bounds = array<i64: 1, 128>}, {transform_indices = @transform_3, window_bounds = array<i64: 1, 16, 128>}]} {
    %c2_i32 = arith.constant 2 : i32
    %0 = arith.remsi %arg1, %c2_i32 : i32
    %c0_i32 = arith.constant 0 : i32
    %1 = arith.cmpi eq, %arg1, %c0_i32 : i32
    %2 = arith.extui %1 : i1 to i32
    %c0_i32_0 = arith.constant 0 : i32
    %3 = arith.cmpi ne, %2, %c0_i32_0 : i32
    scf.if %3 {
      %c16_i32_60 = arith.constant 16 : i32
      %91 = arith.muli %arg1, %c16_i32_60 : i32
      %92 = tpu.assume_multiple %91, 8 : i32
      %c0_i32_61 = arith.constant 0 : i32
      %93 = tpu.memref_slice %arg2[%arg0, %92, %c0_i32_61] : memref<2x32x128xf32, #tpu.memory_space<any>> -> memref<1x32x128xf32, #tpu.memory_space<any>>
      %94 = tpu.memref_squeeze %93 : memref<1x32x128xf32, #tpu.memory_space<any>> -> memref<32x128xf32, #tpu.memory_space<any>>
      %c0_i32_62 = arith.constant 0 : i32
      %c0_i32_63 = arith.constant 0 : i32
      %95 = tpu.memref_slice %arg6[%0, %c0_i32_62, %c0_i32_63] : memref<2x32x128xf32, #tpu.memory_space<vmem>> -> memref<1x32x128xf32, #tpu.memory_space<vmem>>
      %96 = tpu.memref_squeeze %95 : memref<1x32x128xf32, #tpu.memory_space<vmem>> -> memref<32x128xf32, #tpu.memory_space<vmem>>
      %97 = tpu.memref_slice %arg7[%0] : memref<2x!tpu.dma_semaphore, #tpu.memory_space<semaphore_mem>> -> memref<1x!tpu.dma_semaphore, #tpu.memory_space<semaphore_mem>>
      %98 = tpu.memref_squeeze %97 : memref<1x!tpu.dma_semaphore, #tpu.memory_space<semaphore_mem>> -> memref<!tpu.dma_semaphore, #tpu.memory_space<semaphore_mem>>
      tpu.enqueue_dma source(%94 : memref<32x128xf32, #tpu.memory_space<any>>) target(%96 : memref<32x128xf32, #tpu.memory_space<vmem>>) target_semaphore(%98 : memref<!tpu.dma_semaphore, #tpu.memory_space<semaphore_mem>>)
    } else {
    }
    %c16_i32 = arith.constant 16 : i32
    %4 = arith.muli %arg1, %c16_i32 : i32
    %5 = tpu.assume_multiple %4, 8 : i32
    %c0_i32_1 = arith.constant 0 : i32
    %6 = tpu.memref_slice %arg2[%arg0, %5, %c0_i32_1] : memref<2x32x128xf32, #tpu.memory_space<any>> -> memref<1x32x128xf32, #tpu.memory_space<any>>
    %7 = tpu.memref_squeeze %6 : memref<1x32x128xf32, #tpu.memory_space<any>> -> memref<32x128xf32, #tpu.memory_space<any>>
    %c0_i32_2 = arith.constant 0 : i32
    %c0_i32_3 = arith.constant 0 : i32
    %8 = tpu.memref_slice %arg6[%0, %c0_i32_2, %c0_i32_3] : memref<2x32x128xf32, #tpu.memory_space<vmem>> -> memref<1x32x128xf32, #tpu.memory_space<vmem>>
    %9 = tpu.memref_squeeze %8 : memref<1x32x128xf32, #tpu.memory_space<vmem>> -> memref<32x128xf32, #tpu.memory_space<vmem>>
    %10 = tpu.memref_slice %arg7[%0] : memref<2x!tpu.dma_semaphore, #tpu.memory_space<semaphore_mem>> -> memref<1x!tpu.dma_semaphore, #tpu.memory_space<semaphore_mem>>
    %11 = tpu.memref_squeeze %10 : memref<1x!tpu.dma_semaphore, #tpu.memory_space<semaphore_mem>> -> memref<!tpu.dma_semaphore, #tpu.memory_space<semaphore_mem>>
    tpu.wait_dma2 semaphore(%11 : memref<!tpu.dma_semaphore, #tpu.memory_space<semaphore_mem>>) src(%7 : memref<32x128xf32, #tpu.memory_space<any>>) dst(%9 : memref<32x128xf32, #tpu.memory_space<vmem>>)
    %c1_i32 = arith.constant 1 : i32
    %12 = arith.addi %arg1, %c1_i32 : i32
    %c1_i32_4 = arith.constant 1 : i32
    %13 = arith.cmpi slt, %12, %c1_i32_4 : i32
    %14 = arith.extui %13 : i1 to i32
    %c0_i32_5 = arith.constant 0 : i32
    %15 = arith.cmpi ne, %14, %c0_i32_5 : i32
    scf.if %15 {
      %c1_i32_60 = arith.constant 1 : i32
      %91 = arith.addi %arg1, %c1_i32_60 : i32
      %c1_i32_61 = arith.constant 1 : i32
      %92 = arith.subi %c1_i32_61, %0 : i32
      %c16_i32_62 = arith.constant 16 : i32
      %93 = arith.muli %91, %c16_i32_62 : i32
      %94 = tpu.assume_multiple %93, 8 : i32
      %c0_i32_63 = arith.constant 0 : i32
      %95 = tpu.memref_slice %arg2[%arg0, %94, %c0_i32_63] : memref<2x32x128xf32, #tpu.memory_space<any>> -> memref<1x32x128xf32, #tpu.memory_space<any>>
      %96 = tpu.memref_squeeze %95 : memref<1x32x128xf32, #tpu.memory_space<any>> -> memref<32x128xf32, #tpu.memory_space<any>>
      %c0_i32_64 = arith.constant 0 : i32
      %c0_i32_65 = arith.constant 0 : i32
      %97 = tpu.memref_slice %arg6[%92, %c0_i32_64, %c0_i32_65] : memref<2x32x128xf32, #tpu.memory_space<vmem>> -> memref<1x32x128xf32, #tpu.memory_space<vmem>>
      %98 = tpu.memref_squeeze %97 : memref<1x32x128xf32, #tpu.memory_space<vmem>> -> memref<32x128xf32, #tpu.memory_space<vmem>>
      %99 = tpu.memref_slice %arg7[%92] : memref<2x!tpu.dma_semaphore, #tpu.memory_space<semaphore_mem>> -> memref<1x!tpu.dma_semaphore, #tpu.memory_space<semaphore_mem>>
      %100 = tpu.memref_squeeze %99 : memref<1x!tpu.dma_semaphore, #tpu.memory_space<semaphore_mem>> -> memref<!tpu.dma_semaphore, #tpu.memory_space<semaphore_mem>>
      tpu.enqueue_dma source(%96 : memref<32x128xf32, #tpu.memory_space<any>>) target(%98 : memref<32x128xf32, #tpu.memory_space<vmem>>) target_semaphore(%100 : memref<!tpu.dma_semaphore, #tpu.memory_space<semaphore_mem>>)
    } else {
    }
    %16 = arith.index_cast %0 : i32 to index
    %c0 = arith.constant 0 : index
    %c0_6 = arith.constant 0 : index
    %17 = vector.load %arg6[%16, %c0, %c0_6] : memref<2x32x128xf32, #tpu.memory_space<vmem>>, vector<1x32x128xf32>
    %18 = vector.shape_cast %17 : vector<1x32x128xf32> to vector<32x128xf32>
    %c0_7 = arith.constant 0 : index
    %c0_8 = arith.constant 0 : index
    %19 = vector.load %arg4[%c0_7, %c0_8] : memref<1x128xf32, #tpu.memory_space<vmem>>, vector<1x128xf32>
    %20 = vector.extract_strided_slice %18 {offsets = [0, 0], sizes = [16, 128], strides = [1, 1]} : vector<32x128xf32> to vector<16x128xf32>
    %21 = vector.extract_strided_slice %18 {offsets = [1, 0], sizes = [16, 128], strides = [1, 1]} : vector<32x128xf32> to vector<16x128xf32>
    %22 = tpu.concatenate %20, %21 in 1 : vector<16x128xf32>, vector<16x128xf32> -> vector<16x256xf32>
    %c0_9 = arith.constant 0 : index
    %c0_10 = arith.constant 0 : index
    %c0_11 = arith.constant 0 : index
    %23 = vector.load %arg3[%c0_9, %c0_10, %c0_11] : memref<6x256x128xf32, #tpu.memory_space<vmem>>, vector<1x256x128xf32>
    %24 = vector.shape_cast %23 : vector<1x256x128xf32> to vector<256x128xf32>
    %cst = arith.constant dense<0.000000e+00> : vector<16x128xf32>
    %25 = tpu.matmul %22, %24, %cst {dimension_numbers = #tpu.dot_dimension_numbers<[1], [0], [0], [1], [0, 0, 1, 1], [], []>} : vector<16x256xf32>, vector<256x128xf32>, vector<16x128xf32> -> vector<16x128xf32>
    %26 = vector.broadcast %19 : vector<1x128xf32> to vector<16x128xf32>
    %27 = arith.addf %26, %25 : vector<16x128xf32>
    %c0_12 = arith.constant 0 : index
    %c0_13 = arith.constant 0 : index
    %c0_14 = arith.constant 0 : index
    %28 = vector.load %arg5[%c0_12, %c0_13, %c0_14] : memref<1x16x128xf32, #tpu.memory_space<vmem>>, vector<1x16x128xf32>
    %29 = vector.shape_cast %28 : vector<1x16x128xf32> to vector<16x128xf32>
    %30 = vector.shape_cast %27 : vector<16x128xf32> to vector<1x16x128xf32>
    tpu.vector_store %arg5[%c0_12, %c0_13, %c0_14], %30 {strides = array<i32>} : memref<1x16x128xf32, #tpu.memory_space<vmem>>, vector<1x16x128xf32>,
    %c0_15 = arith.constant 0 : index
    %c0_16 = arith.constant 0 : index
    %c0_17 = arith.constant 0 : index
    %31 = vector.load %arg5[%c0_15, %c0_16, %c0_17] : memref<1x16x128xf32, #tpu.memory_space<vmem>>, vector<1x16x128xf32>
    %32 = vector.shape_cast %31 : vector<1x16x128xf32> to vector<16x128xf32>
    %33 = vector.extract_strided_slice %18 {offsets = [2, 0], sizes = [16, 128], strides = [1, 1]} : vector<32x128xf32> to vector<16x128xf32>
    %34 = vector.extract_strided_slice %18 {offsets = [3, 0], sizes = [16, 128], strides = [1, 1]} : vector<32x128xf32> to vector<16x128xf32>
    %35 = tpu.concatenate %33, %34 in 1 : vector<16x128xf32>, vector<16x128xf32> -> vector<16x256xf32>
    %c1 = arith.constant 1 : index
    %c0_18 = arith.constant 0 : index
    %c0_19 = arith.constant 0 : index
    %36 = vector.load %arg3[%c1, %c0_18, %c0_19] : memref<6x256x128xf32, #tpu.memory_space<vmem>>, vector<1x256x128xf32>
    %37 = vector.shape_cast %36 : vector<1x256x128xf32> to vector<256x128xf32>
    %cst_20 = arith.constant dense<0.000000e+00> : vector<16x128xf32>
    %38 = tpu.matmul %35, %37, %cst_20 {dimension_numbers = #tpu.dot_dimension_numbers<[1], [0], [0], [1], [0, 0, 1, 1], [], []>} : vector<16x256xf32>, vector<256x128xf32>, vector<16x128xf32> -> vector<16x128xf32>
    %39 = arith.addf %32, %38 : vector<16x128xf32>
    %c0_21 = arith.constant 0 : index
    %c0_22 = arith.constant 0 : index
    %c0_23 = arith.constant 0 : index
    %40 = vector.load %arg5[%c0_21, %c0_22, %c0_23] : memref<1x16x128xf32, #tpu.memory_space<vmem>>, vector<1x16x128xf32>
    %41 = vector.shape_cast %40 : vector<1x16x128xf32> to vector<16x128xf32>
    %42 = vector.shape_cast %39 : vector<16x128xf32> to vector<1x16x128xf32>
    tpu.vector_store %arg5[%c0_21, %c0_22, %c0_23], %42 {strides = array<i32>} : memref<1x16x128xf32, #tpu.memory_space<vmem>>, vector<1x16x128xf32>,
    %c0_24 = arith.constant 0 : index
    %c0_25 = arith.constant 0 : index
    %c0_26 = arith.constant 0 : index
    %43 = vector.load %arg5[%c0_24, %c0_25, %c0_26] : memref<1x16x128xf32, #tpu.memory_space<vmem>>, vector<1x16x128xf32>
    %44 = vector.shape_cast %43 : vector<1x16x128xf32> to vector<16x128xf32>
    %45 = vector.extract_strided_slice %18 {offsets = [4, 0], sizes = [16, 128], strides = [1, 1]} : vector<32x128xf32> to vector<16x128xf32>
    %46 = vector.extract_strided_slice %18 {offsets = [5, 0], sizes = [16, 128], strides = [1, 1]} : vector<32x128xf32> to vector<16x128xf32>
    %47 = tpu.concatenate %45, %46 in 1 : vector<16x128xf32>, vector<16x128xf32> -> vector<16x256xf32>
    %c2 = arith.constant 2 : index
    %c0_27 = arith.constant 0 : index
    %c0_28 = arith.constant 0 : index
    %48 = vector.load %arg3[%c2, %c0_27, %c0_28] : memref<6x256x128xf32, #tpu.memory_space<vmem>>, vector<1x256x128xf32>
    %49 = vector.shape_cast %48 : vector<1x256x128xf32> to vector<256x128xf32>
    %cst_29 = arith.constant dense<0.000000e+00> : vector<16x128xf32>
    %50 = tpu.matmul %47, %49, %cst_29 {dimension_numbers = #tpu.dot_dimension_numbers<[1], [0], [0], [1], [0, 0, 1, 1], [], []>} : vector<16x256xf32>, vector<256x128xf32>, vector<16x128xf32> -> vector<16x128xf32>
    %51 = arith.addf %44, %50 : vector<16x128xf32>
    %c0_30 = arith.constant 0 : index
    %c0_31 = arith.constant 0 : index
    %c0_32 = arith.constant 0 : index
    %52 = vector.load %arg5[%c0_30, %c0_31, %c0_32] : memref<1x16x128xf32, #tpu.memory_space<vmem>>, vector<1x16x128xf32>
    %53 = vector.shape_cast %52 : vector<1x16x128xf32> to vector<16x128xf32>
    %54 = vector.shape_cast %51 : vector<16x128xf32> to vector<1x16x128xf32>
    tpu.vector_store %arg5[%c0_30, %c0_31, %c0_32], %54 {strides = array<i32>} : memref<1x16x128xf32, #tpu.memory_space<vmem>>, vector<1x16x128xf32>,
    %c0_33 = arith.constant 0 : index
    %c0_34 = arith.constant 0 : index
    %c0_35 = arith.constant 0 : index
    %55 = vector.load %arg5[%c0_33, %c0_34, %c0_35] : memref<1x16x128xf32, #tpu.memory_space<vmem>>, vector<1x16x128xf32>
    %56 = vector.shape_cast %55 : vector<1x16x128xf32> to vector<16x128xf32>
    %57 = vector.extract_strided_slice %18 {offsets = [6, 0], sizes = [16, 128], strides = [1, 1]} : vector<32x128xf32> to vector<16x128xf32>
    %58 = vector.extract_strided_slice %18 {offsets = [7, 0], sizes = [16, 128], strides = [1, 1]} : vector<32x128xf32> to vector<16x128xf32>
    %59 = tpu.concatenate %57, %58 in 1 : vector<16x128xf32>, vector<16x128xf32> -> vector<16x256xf32>
    %c3 = arith.constant 3 : index
    %c0_36 = arith.constant 0 : index
    %c0_37 = arith.constant 0 : index
    %60 = vector.load %arg3[%c3, %c0_36, %c0_37] : memref<6x256x128xf32, #tpu.memory_space<vmem>>, vector<1x256x128xf32>
    %61 = vector.shape_cast %60 : vector<1x256x128xf32> to vector<256x128xf32>
    %cst_38 = arith.constant dense<0.000000e+00> : vector<16x128xf32>
    %62 = tpu.matmul %59, %61, %cst_38 {dimension_numbers = #tpu.dot_dimension_numbers<[1], [0], [0], [1], [0, 0, 1, 1], [], []>} : vector<16x256xf32>, vector<256x128xf32>, vector<16x128xf32> -> vector<16x128xf32>
    %63 = arith.addf %56, %62 : vector<16x128xf32>
    %c0_39 = arith.constant 0 : index
    %c0_40 = arith.constant 0 : index
    %c0_41 = arith.constant 0 : index
    %64 = vector.load %arg5[%c0_39, %c0_40, %c0_41] : memref<1x16x128xf32, #tpu.memory_space<vmem>>, vector<1x16x128xf32>
    %65 = vector.shape_cast %64 : vector<1x16x128xf32> to vector<16x128xf32>
    %66 = vector.shape_cast %63 : vector<16x128xf32> to vector<1x16x128xf32>
    tpu.vector_store %arg5[%c0_39, %c0_40, %c0_41], %66 {strides = array<i32>} : memref<1x16x128xf32, #tpu.memory_space<vmem>>, vector<1x16x128xf32>,
    %c0_42 = arith.constant 0 : index
    %c0_43 = arith.constant 0 : index
    %c0_44 = arith.constant 0 : index
    %67 = vector.load %arg5[%c0_42, %c0_43, %c0_44] : memref<1x16x128xf32, #tpu.memory_space<vmem>>, vector<1x16x128xf32>
    %68 = vector.shape_cast %67 : vector<1x16x128xf32> to vector<16x128xf32>
    %69 = vector.extract_strided_slice %18 {offsets = [8, 0], sizes = [16, 128], strides = [1, 1]} : vector<32x128xf32> to vector<16x128xf32>
    %70 = vector.extract_strided_slice %18 {offsets = [9, 0], sizes = [16, 128], strides = [1, 1]} : vector<32x128xf32> to vector<16x128xf32>
    %71 = tpu.concatenate %69, %70 in 1 : vector<16x128xf32>, vector<16x128xf32> -> vector<16x256xf32>
    %c4 = arith.constant 4 : index
    %c0_45 = arith.constant 0 : index
    %c0_46 = arith.constant 0 : index
    %72 = vector.load %arg3[%c4, %c0_45, %c0_46] : memref<6x256x128xf32, #tpu.memory_space<vmem>>, vector<1x256x128xf32>
    %73 = vector.shape_cast %72 : vector<1x256x128xf32> to vector<256x128xf32>
    %cst_47 = arith.constant dense<0.000000e+00> : vector<16x128xf32>
    %74 = tpu.matmul %71, %73, %cst_47 {dimension_numbers = #tpu.dot_dimension_numbers<[1], [0], [0], [1], [0, 0, 1, 1], [], []>} : vector<16x256xf32>, vector<256x128xf32>, vector<16x128xf32> -> vector<16x128xf32>
    %75 = arith.addf %68, %74 : vector<16x128xf32>
    %c0_48 = arith.constant 0 : index
    %c0_49 = arith.constant 0 : index
    %c0_50 = arith.constant 0 : index
    %76 = vector.load %arg5[%c0_48, %c0_49, %c0_50] : memref<1x16x128xf32, #tpu.memory_space<vmem>>, vector<1x16x128xf32>
    %77 = vector.shape_cast %76 : vector<1x16x128xf32> to vector<16x128xf32>
    %78 = vector.shape_cast %75 : vector<16x128xf32> to vector<1x16x128xf32>
    tpu.vector_store %arg5[%c0_48, %c0_49, %c0_50], %78 {strides = array<i32>} : memref<1x16x128xf32, #tpu.memory_space<vmem>>, vector<1x16x128xf32>,
    %c0_51 = arith.constant 0 : index
    %c0_52 = arith.constant 0 : index
    %c0_53 = arith.constant 0 : index
    %79 = vector.load %arg5[%c0_51, %c0_52, %c0_53] : memref<1x16x128xf32, #tpu.memory_space<vmem>>, vector<1x16x128xf32>
    %80 = vector.shape_cast %79 : vector<1x16x128xf32> to vector<16x128xf32>
    %81 = vector.extract_strided_slice %18 {offsets = [10, 0], sizes = [16, 128], strides = [1, 1]} : vector<32x128xf32> to vector<16x128xf32>
    %82 = vector.extract_strided_slice %18 {offsets = [11, 0], sizes = [16, 128], strides = [1, 1]} : vector<32x128xf32> to vector<16x128xf32>
    %83 = tpu.concatenate %81, %82 in 1 : vector<16x128xf32>, vector<16x128xf32> -> vector<16x256xf32>
    %c5 = arith.constant 5 : index
    %c0_54 = arith.constant 0 : index
    %c0_55 = arith.constant 0 : index
    %84 = vector.load %arg3[%c5, %c0_54, %c0_55] : memref<6x256x128xf32, #tpu.memory_space<vmem>>, vector<1x256x128xf32>
    %85 = vector.shape_cast %84 : vector<1x256x128xf32> to vector<256x128xf32>
    %cst_56 = arith.constant dense<0.000000e+00> : vector<16x128xf32>
    %86 = tpu.matmul %83, %85, %cst_56 {dimension_numbers = #tpu.dot_dimension_numbers<[1], [0], [0], [1], [0, 0, 1, 1], [], []>} : vector<16x256xf32>, vector<256x128xf32>, vector<16x128xf32> -> vector<16x128xf32>
    %87 = arith.addf %80, %86 : vector<16x128xf32>
    %c0_57 = arith.constant 0 : index
    %c0_58 = arith.constant 0 : index
    %c0_59 = arith.constant 0 : index
    %88 = vector.load %arg5[%c0_57, %c0_58, %c0_59] : memref<1x16x128xf32, #tpu.memory_space<vmem>>, vector<1x16x128xf32>
    %89 = vector.shape_cast %88 : vector<1x16x128xf32> to vector<16x128xf32>
    %90 = vector.shape_cast %87 : vector<16x128xf32> to vector<1x16x128xf32>
    tpu.vector_store %arg5[%c0_57, %c0_58, %c0_59], %90 {strides = array<i32>} : memref<1x16x128xf32, #tpu.memory_space<vmem>>, vector<1x16x128xf32>,
    return
  }
  func.func @transform_1(%arg0: i32, %arg1: i32) -> (i32, i32, i32) {
    %c0_i32 = arith.constant 0 : i32
    %c0_i32_0 = arith.constant 0 : i32
    %c0_i32_1 = arith.constant 0 : i32
    %c0_i32_2 = arith.constant 0 : i32
    return %c0_i32, %c0_i32_0, %c0_i32_1 : i32, i32, i32
  }
  func.func @transform_2(%arg0: i32, %arg1: i32) -> (i32, i32) {
    %c0_i32 = arith.constant 0 : i32
    %c0_i32_0 = arith.constant 0 : i32
    %c0_i32_1 = arith.constant 0 : i32
    return %c0_i32, %c0_i32_0 : i32, i32
  }
  func.func @transform_3(%arg0: i32, %arg1: i32) -> (i32, i32, i32) {
    %c0_i32 = arith.constant 0 : i32
    %c0_i32_0 = arith.constant 0 : i32
    return %arg0, %arg1, %c0_i32 : i32, i32, i32
  }
}

module attributes {stable_mosaic.version = 11 : i64} {
  func.func @_conv_kernel(%arg0: i32, %arg1: i32, %arg2: memref<2x32x128xf32, #tpu.memory_space<any>>, %arg3: memref<6x256x128xf32, #tpu.memory_space<vmem>>, %arg4: memref<1x128xf32, #tpu.memory_space<vmem>>, %arg5: memref<1x16x128xf32, #tpu.memory_space<vmem>>, %arg6: memref<2x32x128xf32, #tpu.memory_space<vmem>>, %arg7: memref<2x!tpu.dma_semaphore, #tpu.memory_space<semaphore_mem>>) attributes {dimension_semantics = [#tpu.dimension_semantics<parallel>, #tpu.dimension_semantics<arbitrary>], iteration_bounds = array<i64: 2, 1>, scalar_prefetch = 0 : i64, scratch_operands = 2 : i64, tpu.core_type = #tpu.core_type<tc>, window_params = [{}, {pipeline_mode = #tpu.pipeline_mode<synchronous>, transform_indices = @transform_1, window_bounds = array<i64: 6, 256, 128>}, {pipeline_mode = #tpu.pipeline_mode<synchronous>, transform_indices = @transform_2, window_bounds = array<i64: 1, 128>}, {transform_indices = @transform_3, window_bounds = array<i64: 1, 16, 128>}]} {
    %c2_i32 = arith.constant 2 : i32
    %0 = arith.remsi %arg1, %c2_i32 : i32
    %c0_i32 = arith.constant 0 : i32
    %1 = arith.cmpi eq, %arg1, %c0_i32 : i32
    %2 = arith.extui %1 : i1 to i32
    %c0_i32_0 = arith.constant 0 : i32
    %3 = arith.cmpi ne, %2, %c0_i32_0 : i32
    scf.if %3 {
      %c16_i32_60 = arith.constant 16 : i32
      %91 = arith.muli %arg1, %c16_i32_60 : i32
      %92 = tpu.assume_multiple %91, 8 : i32
      %c0_i32_61 = arith.constant 0 : i32
      %93 = tpu.memref_slice %arg2[%arg0, %92, %c0_i32_61] : memref<2x32x128xf32, #tpu.memory_space<any>> -> memref<1x32x128xf32, #tpu.memory_space<any>>
      %94 = tpu.memref_squeeze %93 : memref<1x32x128xf32, #tpu.memory_space<any>> -> memref<32x128xf32, #tpu.memory_space<any>>
      %c0_i32_62 = arith.constant 0 : i32
      %c0_i32_63 = arith.constant 0 : i32
      %95 = tpu.memref_slice %arg6[%0, %c0_i32_62, %c0_i32_63] : memref<2x32x128xf32, #tpu.memory_space<vmem>> -> memref<1x32x128xf32, #tpu.memory_space<vmem>>
      %96 = tpu.memref_squeeze %95 : memref<1x32x128xf32, #tpu.memory_space<vmem>> -> memref<32x128xf32, #tpu.memory_space<vmem>>
      %97 = tpu.memref_slice %arg7[%0] : memref<2x!tpu.dma_semaphore, #tpu.memory_space<semaphore_mem>> -> memref<1x!tpu.dma_semaphore, #tpu.memory_space<semaphore_mem>>
      %98 = tpu.memref_squeeze %97 : memref<1x!tpu.dma_semaphore, #tpu.memory_space<semaphore_mem>> -> memref<!tpu.dma_semaphore, #tpu.memory_space<semaphore_mem>>
      tpu.enqueue_dma source(%94 : memref<32x128xf32, #tpu.memory_space<any>>) target(%96 : memref<32x128xf32, #tpu.memory_space<vmem>>) target_semaphore(%98 : memref<!tpu.dma_semaphore, #tpu.memory_space<semaphore_mem>>)
    } else {
    }
    %c16_i32 = arith.constant 16 : i32
    %4 = arith.muli %arg1, %c16_i32 : i32
    %5 = tpu.assume_multiple %4, 8 : i32
    %c0_i32_1 = arith.constant 0 : i32
    %6 = tpu.memref_slice %arg2[%arg0, %5, %c0_i32_1] : memref<2x32x128xf32, #tpu.memory_space<any>> -> memref<1x32x128xf32, #tpu.memory_space<any>>
    %7 = tpu.memref_squeeze %6 : memref<1x32x128xf32, #tpu.memory_space<any>> -> memref<32x128xf32, #tpu.memory_space<any>>
    %c0_i32_2 = arith.constant 0 : i32
    %c0_i32_3 = arith.constant 0 : i32
    %8 = tpu.memref_slice %arg6[%0, %c0_i32_2, %c0_i32_3] : memref<2x32x128xf32, #tpu.memory_space<vmem>> -> memref<1x32x128xf32, #tpu.memory_space<vmem>>
    %9 = tpu.memref_squeeze %8 : memref<1x32x128xf32, #tpu.memory_space<vmem>> -> memref<32x128xf32, #tpu.memory_space<vmem>>
    %10 = tpu.memref_slice %arg7[%0] : memref<2x!tpu.dma_semaphore, #tpu.memory_space<semaphore_mem>> -> memref<1x!tpu.dma_semaphore, #tpu.memory_space<semaphore_mem>>
    %11 = tpu.memref_squeeze %10 : memref<1x!tpu.dma_semaphore, #tpu.memory_space<semaphore_mem>> -> memref<!tpu.dma_semaphore, #tpu.memory_space<semaphore_mem>>
    tpu.wait_dma2 semaphore(%11 : memref<!tpu.dma_semaphore, #tpu.memory_space<semaphore_mem>>) src(%7 : memref<32x128xf32, #tpu.memory_space<any>>) dst(%9 : memref<32x128xf32, #tpu.memory_space<vmem>>)
    %c1_i32 = arith.constant 1 : i32
    %12 = arith.addi %arg1, %c1_i32 : i32
    %c1_i32_4 = arith.constant 1 : i32
    %13 = arith.cmpi slt, %12, %c1_i32_4 : i32
    %14 = arith.extui %13 : i1 to i32
    %c0_i32_5 = arith.constant 0 : i32
    %15 = arith.cmpi ne, %14, %c0_i32_5 : i32
    scf.if %15 {
      %c1_i32_60 = arith.constant 1 : i32
      %91 = arith.addi %arg1, %c1_i32_60 : i32
      %c1_i32_61 = arith.constant 1 : i32
      %92 = arith.subi %c1_i32_61, %0 : i32
      %c16_i32_62 = arith.constant 16 : i32
      %93 = arith.muli %91, %c16_i32_62 : i32
      %94 = tpu.assume_multiple %93, 8 : i32
      %c0_i32_63 = arith.constant 0 : i32
      %95 = tpu.memref_slice %arg2[%arg0, %94, %c0_i32_63] : memref<2x32x128xf32, #tpu.memory_space<any>> -> memref<1x32x128xf32, #tpu.memory_space<any>>
      %96 = tpu.memref_squeeze %95 : memref<1x32x128xf32, #tpu.memory_space<any>> -> memref<32x128xf32, #tpu.memory_space<any>>
      %c0_i32_64 = arith.constant 0 : i32
      %c0_i32_65 = arith.constant 0 : i32
      %97 = tpu.memref_slice %arg6[%92, %c0_i32_64, %c0_i32_65] : memref<2x32x128xf32, #tpu.memory_space<vmem>> -> memref<1x32x128xf32, #tpu.memory_space<vmem>>
      %98 = tpu.memref_squeeze %97 : memref<1x32x128xf32, #tpu.memory_space<vmem>> -> memref<32x128xf32, #tpu.memory_space<vmem>>
      %99 = tpu.memref_slice %arg7[%92] : memref<2x!tpu.dma_semaphore, #tpu.memory_space<semaphore_mem>> -> memref<1x!tpu.dma_semaphore, #tpu.memory_space<semaphore_mem>>
      %100 = tpu.memref_squeeze %99 : memref<1x!tpu.dma_semaphore, #tpu.memory_space<semaphore_mem>> -> memref<!tpu.dma_semaphore, #tpu.memory_space<semaphore_mem>>
      tpu.enqueue_dma source(%96 : memref<32x128xf32, #tpu.memory_space<any>>) target(%98 : memref<32x128xf32, #tpu.memory_space<vmem>>) target_semaphore(%100 : memref<!tpu.dma_semaphore, #tpu.memory_space<semaphore_mem>>)
    } else {
    }
    %16 = arith.index_cast %0 : i32 to index
    %c0 = arith.constant 0 : index
    %c0_6 = arith.constant 0 : index
    %17 = vector.load %arg6[%16, %c0, %c0_6] : memref<2x32x128xf32, #tpu.memory_space<vmem>>, vector<1x32x128xf32>
    %18 = vector.shape_cast %17 : vector<1x32x128xf32> to vector<32x128xf32>
    %c0_7 = arith.constant 0 : index
    %c0_8 = arith.constant 0 : index
    %19 = vector.load %arg4[%c0_7, %c0_8] : memref<1x128xf32, #tpu.memory_space<vmem>>, vector<1x128xf32>
    %20 = vector.extract_strided_slice %18 {offsets = [0, 0], sizes = [16, 128], strides = [1, 1]} : vector<32x128xf32> to vector<16x128xf32>
    %21 = vector.extract_strided_slice %18 {offsets = [1, 0], sizes = [16, 128], strides = [1, 1]} : vector<32x128xf32> to vector<16x128xf32>
    %22 = tpu.concatenate %20, %21 in 1 : vector<16x128xf32>, vector<16x128xf32> -> vector<16x256xf32>
    %c0_9 = arith.constant 0 : index
    %c0_10 = arith.constant 0 : index
    %c0_11 = arith.constant 0 : index
    %23 = vector.load %arg3[%c0_9, %c0_10, %c0_11] : memref<6x256x128xf32, #tpu.memory_space<vmem>>, vector<1x256x128xf32>
    %24 = vector.shape_cast %23 : vector<1x256x128xf32> to vector<256x128xf32>
    %cst = arith.constant dense<0.000000e+00> : vector<16x128xf32>
    %25 = tpu.matmul %22, %24, %cst {dimension_numbers = #tpu.dot_dimension_numbers<[1], [0], [0], [1], [0, 0, 1, 1], [], []>} : vector<16x256xf32>, vector<256x128xf32>, vector<16x128xf32> -> vector<16x128xf32>
    %26 = vector.broadcast %19 : vector<1x128xf32> to vector<16x128xf32>
    %27 = arith.addf %26, %25 : vector<16x128xf32>
    %c0_12 = arith.constant 0 : index
    %c0_13 = arith.constant 0 : index
    %c0_14 = arith.constant 0 : index
    %28 = vector.load %arg5[%c0_12, %c0_13, %c0_14] : memref<1x16x128xf32, #tpu.memory_space<vmem>>, vector<1x16x128xf32>
    %29 = vector.shape_cast %28 : vector<1x16x128xf32> to vector<16x128xf32>
    %30 = vector.shape_cast %27 : vector<16x128xf32> to vector<1x16x128xf32>
    tpu.vector_store %arg5[%c0_12, %c0_13, %c0_14], %30 {strides = array<i32>} : memref<1x16x128xf32, #tpu.memory_space<vmem>>, vector<1x16x128xf32>,
    %c0_15 = arith.constant 0 : index
    %c0_16 = arith.constant 0 : index
    %c0_17 = arith.constant 0 : index
    %31 = vector.load %arg5[%c0_15, %c0_16, %c0_17] : memref<1x16x128xf32, #tpu.memory_space<vmem>>, vector<1x16x128xf32>
    %32 = vector.shape_cast %31 : vector<1x16x128xf32> to vector<16x128xf32>
    %33 = vector.extract_strided_slice %18 {offsets = [2, 0], sizes = [16, 128], strides = [1, 1]} : vector<32x128xf32> to vector<16x128xf32>
    %34 = vector.extract_strided_slice %18 {offsets = [3, 0], sizes = [16, 128], strides = [1, 1]} : vector<32x128xf32> to vector<16x128xf32>
    %35 = tpu.concatenate %33, %34 in 1 : vector<16x128xf32>, vector<16x128xf32> -> vector<16x256xf32>
    %c1 = arith.constant 1 : index
    %c0_18 = arith.constant 0 : index
    %c0_19 = arith.constant 0 : index
    %36 = vector.load %arg3[%c1, %c0_18, %c0_19] : memref<6x256x128xf32, #tpu.memory_space<vmem>>, vector<1x256x128xf32>
    %37 = vector.shape_cast %36 : vector<1x256x128xf32> to vector<256x128xf32>
    %cst_20 = arith.constant dense<0.000000e+00> : vector<16x128xf32>
    %38 = tpu.matmul %35, %37, %cst_20 {dimension_numbers = #tpu.dot_dimension_numbers<[1], [0], [0], [1], [0, 0, 1, 1], [], []>} : vector<16x256xf32>, vector<256x128xf32>, vector<16x128xf32> -> vector<16x128xf32>
    %39 = arith.addf %32, %38 : vector<16x128xf32>
    %c0_21 = arith.constant 0 : index
    %c0_22 = arith.constant 0 : index
    %c0_23 = arith.constant 0 : index
    %40 = vector.load %arg5[%c0_21, %c0_22, %c0_23] : memref<1x16x128xf32, #tpu.memory_space<vmem>>, vector<1x16x128xf32>
    %41 = vector.shape_cast %40 : vector<1x16x128xf32> to vector<16x128xf32>
    %42 = vector.shape_cast %39 : vector<16x128xf32> to vector<1x16x128xf32>
    tpu.vector_store %arg5[%c0_21, %c0_22, %c0_23], %42 {strides = array<i32>} : memref<1x16x128xf32, #tpu.memory_space<vmem>>, vector<1x16x128xf32>,
    %c0_24 = arith.constant 0 : index
    %c0_25 = arith.constant 0 : index
    %c0_26 = arith.constant 0 : index
    %43 = vector.load %arg5[%c0_24, %c0_25, %c0_26] : memref<1x16x128xf32, #tpu.memory_space<vmem>>, vector<1x16x128xf32>
    %44 = vector.shape_cast %43 : vector<1x16x128xf32> to vector<16x128xf32>
    %45 = vector.extract_strided_slice %18 {offsets = [4, 0], sizes = [16, 128], strides = [1, 1]} : vector<32x128xf32> to vector<16x128xf32>
    %46 = vector.extract_strided_slice %18 {offsets = [5, 0], sizes = [16, 128], strides = [1, 1]} : vector<32x128xf32> to vector<16x128xf32>
    %47 = tpu.concatenate %45, %46 in 1 : vector<16x128xf32>, vector<16x128xf32> -> vector<16x256xf32>
    %c2 = arith.constant 2 : index
    %c0_27 = arith.constant 0 : index
    %c0_28 = arith.constant 0 : index
    %48 = vector.load %arg3[%c2, %c0_27, %c0_28] : memref<6x256x128xf32, #tpu.memory_space<vmem>>, vector<1x256x128xf32>
    %49 = vector.shape_cast %48 : vector<1x256x128xf32> to vector<256x128xf32>
    %cst_29 = arith.constant dense<0.000000e+00> : vector<16x128xf32>
    %50 = tpu.matmul %47, %49, %cst_29 {dimension_numbers = #tpu.dot_dimension_numbers<[1], [0], [0], [1], [0, 0, 1, 1], [], []>} : vector<16x256xf32>, vector<256x128xf32>, vector<16x128xf32> -> vector<16x128xf32>
    %51 = arith.addf %44, %50 : vector<16x128xf32>
    %c0_30 = arith.constant 0 : index
    %c0_31 = arith.constant 0 : index
    %c0_32 = arith.constant 0 : index
    %52 = vector.load %arg5[%c0_30, %c0_31, %c0_32] : memref<1x16x128xf32, #tpu.memory_space<vmem>>, vector<1x16x128xf32>
    %53 = vector.shape_cast %52 : vector<1x16x128xf32> to vector<16x128xf32>
    %54 = vector.shape_cast %51 : vector<16x128xf32> to vector<1x16x128xf32>
    tpu.vector_store %arg5[%c0_30, %c0_31, %c0_32], %54 {strides = array<i32>} : memref<1x16x128xf32, #tpu.memory_space<vmem>>, vector<1x16x128xf32>,
    %c0_33 = arith.constant 0 : index
    %c0_34 = arith.constant 0 : index
    %c0_35 = arith.constant 0 : index
    %55 = vector.load %arg5[%c0_33, %c0_34, %c0_35] : memref<1x16x128xf32, #tpu.memory_space<vmem>>, vector<1x16x128xf32>
    %56 = vector.shape_cast %55 : vector<1x16x128xf32> to vector<16x128xf32>
    %57 = vector.extract_strided_slice %18 {offsets = [6, 0], sizes = [16, 128], strides = [1, 1]} : vector<32x128xf32> to vector<16x128xf32>
    %58 = vector.extract_strided_slice %18 {offsets = [7, 0], sizes = [16, 128], strides = [1, 1]} : vector<32x128xf32> to vector<16x128xf32>
    %59 = tpu.concatenate %57, %58 in 1 : vector<16x128xf32>, vector<16x128xf32> -> vector<16x256xf32>
    %c3 = arith.constant 3 : index
    %c0_36 = arith.constant 0 : index
    %c0_37 = arith.constant 0 : index
    %60 = vector.load %arg3[%c3, %c0_36, %c0_37] : memref<6x256x128xf32, #tpu.memory_space<vmem>>, vector<1x256x128xf32>
    %61 = vector.shape_cast %60 : vector<1x256x128xf32> to vector<256x128xf32>
    %cst_38 = arith.constant dense<0.000000e+00> : vector<16x128xf32>
    %62 = tpu.matmul %59, %61, %cst_38 {dimension_numbers = #tpu.dot_dimension_numbers<[1], [0], [0], [1], [0, 0, 1, 1], [], []>} : vector<16x256xf32>, vector<256x128xf32>, vector<16x128xf32> -> vector<16x128xf32>
    %63 = arith.addf %56, %62 : vector<16x128xf32>
    %c0_39 = arith.constant 0 : index
    %c0_40 = arith.constant 0 : index
    %c0_41 = arith.constant 0 : index
    %64 = vector.load %arg5[%c0_39, %c0_40, %c0_41] : memref<1x16x128xf32, #tpu.memory_space<vmem>>, vector<1x16x128xf32>
    %65 = vector.shape_cast %64 : vector<1x16x128xf32> to vector<16x128xf32>
    %66 = vector.shape_cast %63 : vector<16x128xf32> to vector<1x16x128xf32>
    tpu.vector_store %arg5[%c0_39, %c0_40, %c0_41], %66 {strides = array<i32>} : memref<1x16x128xf32, #tpu.memory_space<vmem>>, vector<1x16x128xf32>,
    %c0_42 = arith.constant 0 : index
    %c0_43 = arith.constant 0 : index
    %c0_44 = arith.constant 0 : index
    %67 = vector.load %arg5[%c0_42, %c0_43, %c0_44] : memref<1x16x128xf32, #tpu.memory_space<vmem>>, vector<1x16x128xf32>
    %68 = vector.shape_cast %67 : vector<1x16x128xf32> to vector<16x128xf32>
    %69 = vector.extract_strided_slice %18 {offsets = [8, 0], sizes = [16, 128], strides = [1, 1]} : vector<32x128xf32> to vector<16x128xf32>
    %70 = vector.extract_strided_slice %18 {offsets = [9, 0], sizes = [16, 128], strides = [1, 1]} : vector<32x128xf32> to vector<16x128xf32>
    %71 = tpu.concatenate %69, %70 in 1 : vector<16x128xf32>, vector<16x128xf32> -> vector<16x256xf32>
    %c4 = arith.constant 4 : index
    %c0_45 = arith.constant 0 : index
    %c0_46 = arith.constant 0 : index
    %72 = vector.load %arg3[%c4, %c0_45, %c0_46] : memref<6x256x128xf32, #tpu.memory_space<vmem>>, vector<1x256x128xf32>
    %73 = vector.shape_cast %72 : vector<1x256x128xf32> to vector<256x128xf32>
    %cst_47 = arith.constant dense<0.000000e+00> : vector<16x128xf32>
    %74 = tpu.matmul %71, %73, %cst_47 {dimension_numbers = #tpu.dot_dimension_numbers<[1], [0], [0], [1], [0, 0, 1, 1], [], []>} : vector<16x256xf32>, vector<256x128xf32>, vector<16x128xf32> -> vector<16x128xf32>
    %75 = arith.addf %68, %74 : vector<16x128xf32>
    %c0_48 = arith.constant 0 : index
    %c0_49 = arith.constant 0 : index
    %c0_50 = arith.constant 0 : index
    %76 = vector.load %arg5[%c0_48, %c0_49, %c0_50] : memref<1x16x128xf32, #tpu.memory_space<vmem>>, vector<1x16x128xf32>
    %77 = vector.shape_cast %76 : vector<1x16x128xf32> to vector<16x128xf32>
    %78 = vector.shape_cast %75 : vector<16x128xf32> to vector<1x16x128xf32>
    tpu.vector_store %arg5[%c0_48, %c0_49, %c0_50], %78 {strides = array<i32>} : memref<1x16x128xf32, #tpu.memory_space<vmem>>, vector<1x16x128xf32>,
    %c0_51 = arith.constant 0 : index
    %c0_52 = arith.constant 0 : index
    %c0_53 = arith.constant 0 : index
    %79 = vector.load %arg5[%c0_51, %c0_52, %c0_53] : memref<1x16x128xf32, #tpu.memory_space<vmem>>, vector<1x16x128xf32>
    %80 = vector.shape_cast %79 : vector<1x16x128xf32> to vector<16x128xf32>
    %81 = vector.extract_strided_slice %18 {offsets = [10, 0], sizes = [16, 128], strides = [1, 1]} : vector<32x128xf32> to vector<16x128xf32>
    %82 = vector.extract_strided_slice %18 {offsets = [11, 0], sizes = [16, 128], strides = [1, 1]} : vector<32x128xf32> to vector<16x128xf32>
    %83 = tpu.concatenate %81, %82 in 1 : vector<16x128xf32>, vector<16x128xf32> -> vector<16x256xf32>
    %c5 = arith.constant 5 : index
    %c0_54 = arith.constant 0 : index
    %c0_55 = arith.constant 0 : index
    %84 = vector.load %arg3[%c5, %c0_54, %c0_55] : memref<6x256x128xf32, #tpu.memory_space<vmem>>, vector<1x256x128xf32>
    %85 = vector.shape_cast %84 : vector<1x256x128xf32> to vector<256x128xf32>
    %cst_56 = arith.constant dense<0.000000e+00> : vector<16x128xf32>
    %86 = tpu.matmul %83, %85, %cst_56 {dimension_numbers = #tpu.dot_dimension_numbers<[1], [0], [0], [1], [0, 0, 1, 1], [], []>} : vector<16x256xf32>, vector<256x128xf32>, vector<16x128xf32> -> vector<16x128xf32>
    %87 = arith.addf %80, %86 : vector<16x128xf32>
    %c0_57 = arith.constant 0 : index
    %c0_58 = arith.constant 0 : index
    %c0_59 = arith.constant 0 : index
    %88 = vector.load %arg5[%c0_57, %c0_58, %c0_59] : memref<1x16x128xf32, #tpu.memory_space<vmem>>, vector<1x16x128xf32>
    %89 = vector.shape_cast %88 : vector<1x16x128xf32> to vector<16x128xf32>
    %90 = vector.shape_cast %87 : vector<16x128xf32> to vector<1x16x128xf32>
    tpu.vector_store %arg5[%c0_57, %c0_58, %c0_59], %90 {strides = array<i32>} : memref<1x16x128xf32, #tpu.memory_space<vmem>>, vector<1x16x128xf32>,
    return
  }
  func.func @transform_1(%arg0: i32, %arg1: i32) -> (i32, i32, i32) {
    %c0_i32 = arith.constant 0 : i32
    %c0_i32_0 = arith.constant 0 : i32
    %c0_i32_1 = arith.constant 0 : i32
    %c0_i32_2 = arith.constant 0 : i32
    return %c0_i32, %c0_i32_0, %c0_i32_1 : i32, i32, i32
  }
  func.func @transform_2(%arg0: i32, %arg1: i32) -> (i32, i32) {
    %c0_i32 = arith.constant 0 : i32
    %c0_i32_0 = arith.constant 0 : i32
    %c0_i32_1 = arith.constant 0 : i32
    return %c0_i32, %c0_i32_0 : i32, i32
  }
  func.func @transform_3(%arg0: i32, %arg1: i32) -> (i32, i32, i32) {
    %c0_i32 = arith.constant 0 : i32
    %c0_i32_0 = arith.constant 0 : i32
    return %arg0, %arg1, %c0_i32 : i32, i32, i32
  }
}

</mosaic_0001>

<llo_original>
// kernel: tpu_custom_call.1
$region0: #{tpu_custom_call.1}
  #allocation0 [shape = 'u32[]', space=smem, size = 0x4, offset = 0x4, fixed_abs, tag = 'smem constant byte address 0x4 - core index']
  #allocation1 [shape = 'u32[72,128]{1,0:T(1,128)}', space=vmem, size = 0x9000, scoped, tag = 'internal scratch']
  #allocation2 [shape = 'f32[2,32,128]{2,1,0:T(8,128)}', space=vmem, size = 0x8000, scoped, tag = 'scratch operand']
  #allocation3 [shape = 's32[2]{0}', space=sflag, size = 0x8, scoped, tag = 'scratch operand']
  #allocation8 [shape = 's32[]', space=sflag, size = 0x4, offset = 0, fixed_abs, tag = 'sflag constant byte address 0x0 - dummy sync flag']
  #allocation9 [shape = 's32[]', space=sflag, size = 0x4, offset = 0, fixed_abs, tag = 'sflag constant byte address 0x0 - dummy sync flag']
  #allocation10 [shape = 'u32[]', space=smem, size = 0x4, offset = 0x44, fixed_abs, tag = 'smem constant byte address 0x44 - assertion arg 0']
  #allocation11 [shape = 'u32[]', space=smem, size = 0x4, offset = 0x48, fixed_abs, tag = 'smem constant byte address 0x48 - assertion arg 1']
  #allocation12 [shape = 's32[]', space=sflag, size = 0x4, offset = 0, fixed_abs, tag = 'sflag constant byte address 0x0 - dummy sync flag']
  #allocation13 [shape = 's32[]', space=sflag, size = 0x4, offset = 0, fixed_abs, tag = 'sflag constant byte address 0x0 - dummy sync flag']
  %s0 = inlined_call_operand.hbm [shape: f32[2,32,128], index: 0, kind: input, shape index: {}]
  %s1 = inlined_call_operand.hbm [shape: f32[6,256,128], index: 1, kind: input, shape index: {}]
  %s2 = inlined_call_operand.vmem [shape: f32[1,128], index: 2, kind: input, shape index: {}]
  %s3 = inlined_call_operand.hbm [shape: f32[2,16,128], index: 3, kind: output, shape index: {}]
  %s4 = sld [smem:[#allocation0]]
  $region61: #{tpu_custom_call.1} parent=0
    _
  %s6 = ssub.s32 1, %s4
  %s7 = scalar_select 0, %s6, %s4
  $region1: #{tpu_custom_call.1} parent=0
    #allocation4 [shape = 'u8[786432]{0}', space=vmem, size = 0xc0000, scoped, tag = 'input window, operand 1, single buffered']
    #allocation5 [shape = 's32[2]{0}', space=sflag, size = 0x8, scoped, tag = 'scoped memory for tpu_custom_call.1']
    #allocation6 [shape = 's32[2]{0}', space=sflag, size = 0x8, scoped, tag = 'scoped memory for tpu_custom_call.1']
    #allocation7 [shape = 'u8[16384]{0}', space=vmem, size = 0x4000, scoped, tag = 'output window, operand 0']
    %8 = vsyncpa [#allocation5], 0
    %9 = vsyncpa [#allocation6], 0
    %s10 = scalar_lea.sflag [#allocation6], 1
    %11 = vsyncpa %s10, 0
    loop: start=0, step=1, limit=4
    $region2: #{tpu_custom_call.1} parent=1 // loop_pre_header
      _
    $region3: #{tpu_custom_call.1} parent=1 // loop_header
      %s13 = sphi 0, %s17
      %p14 = scmp.ge.s32.totalorder %s13, 4
      %s20 = sphi 0, %s32
      %s21 = sphi 0, %s28
      %s22 = sphi 0, %s20
      %s23 = sphi 0, %s21
      %s24 = sphi 0, %s22
      %s25 = sphi 0, %s23
      %s33 = sphi 0, %s33
      %s35 = sphi 0, %s33
      %s36 = sphi 0, %s35
      %s50 = sphi 0, %s36
      %s54 = sphi 0, %s54
      %s56 = sphi 0, %s54
      %s57 = sphi 0, %s56
      %s71 = sphi 0, %s57
      %s79 = sphi 0, %s81
      %s82 = sphi 0, %s79
      %s83 = sphi 0, %s82
      %s99 = sphi 0, %s83
    $region4: #{tpu_custom_call.1} parent=1 // loop_header_branch
      %16 = sbr.rel (%p14) target = $region8
    $region5: #{tpu_custom_call.1} parent=1 // loop_body
      %s18 = ssub.s32 %s13, 1
      %s19 = ssub.s32 %s13, 2
      %s26 = sadd.s32 1, %s21
      %p27 = scmp.ge.s32.totalorder %s26, 1
      %s28 = scalar_select %p27, 0, %s26
      %s29 = sadd.s32 1, %s20
      %s30 = scalar_select %p27, %s29, %s20
      %p31 = scmp.ge.s32.totalorder %s30, 2
      %s32 = scalar_select %p31, 0, %s30
      %s34 = sadd.s32 %s33, 1
      %p37 = scmp.eq.s32.totalorder %s13, 1
      %p38 = scmp.ne.s32.totalorder %s33, %s35
      %p39 = scmp.eq.s32.totalorder %s13, 0
      %p40 = por %p38, %p39
      %p41 = scmp.ne.s32.totalorder %s33, %s35
      %p42 = scmp.eq.s32.totalorder %s18, 1
      %p43 = por %p41, %p42
      %p44 = scmp.ne.s32.totalorder %s35, %s36
      %p45 = scmp.eq.s32.totalorder %s18, 0
      %p46 = por %p44, %p45
      %p47 = scmp.ne.s32.totalorder %s35, %s36
      %p48 = scmp.eq.s32.totalorder %s19, 1
      %p49 = por %p47, %p48
      %p51 = scmp.ne.s32.totalorder %s36, %s50
      %p52 = scmp.eq.s32.totalorder %s19, 0
      %p53 = por %p51, %p52
      %s55 = sadd.s32 %s54, 1
      %p58 = scmp.eq.s32.totalorder %s13, 1
      %p59 = scmp.ne.s32.totalorder %s54, %s56
      %p60 = scmp.eq.s32.totalorder %s13, 0
      %p61 = por %p59, %p60
      %p62 = scmp.ne.s32.totalorder %s54, %s56
      %p63 = scmp.eq.s32.totalorder %s18, 1
      %p64 = por %p62, %p63
      %p65 = scmp.ne.s32.totalorder %s56, %s57
      %p66 = scmp.eq.s32.totalorder %s18, 0
      %p67 = por %p65, %p66
      %p68 = scmp.ne.s32.totalorder %s56, %s57
      %p69 = scmp.eq.s32.totalorder %s19, 1
      %p70 = por %p68, %p69
      %p72 = scmp.ne.s32.totalorder %s57, %s71
      %p73 = scmp.eq.s32.totalorder %s19, 0
      %p74 = por %p72, %p73
      %s75 = ssub.s32 %s20, %s32
      %s76 = ssub.s32 %s21, %s28
      %s77 = sor.u32 %s75, %s76
      %p78 = scmp.eq.s32.totalorder %s77, 0
      %s80 = sadd.s32 %s79, 1
      %s81 = scalar_select %p78, %s79, %s80
      %p84 = pneg %p78
      %p85 = scmp.eq.s32.totalorder %s13, 1
      %p86 = por %p84, %p85
      %p87 = scmp.ne.s32.totalorder %s79, %s82
      %p88 = scmp.eq.s32.totalorder %s13, 0
      %p89 = por %p87, %p88
      %p90 = scmp.ne.s32.totalorder %s79, %s82
      %p91 = scmp.eq.s32.totalorder %s18, 1
      %p92 = por %p90, %p91
      %p93 = scmp.ne.s32.totalorder %s82, %s83
      %p94 = scmp.eq.s32.totalorder %s18, 0
      %p95 = por %p93, %p94
      %p96 = scmp.ne.s32.totalorder %s82, %s83
      %p97 = scmp.eq.s32.totalorder %s19, 1
      %p98 = por %p96, %p97
      %p100 = scmp.ne.s32.totalorder %s83, %s99
      %p101 = scmp.eq.s32.totalorder %s19, 0
      %p102 = por %p100, %p101
      %p103 = scmp.le.s32.totalorder 1, %s13
      %p104 = scmp.lt.s32.totalorder %s13, 3
      %p105 = pnand %p103, %p104
      %p106 = pneg %p105
      // Predicated region
      $region9: #{tpu_custom_call.1} parent=5 // pred_check
        _
      $region10: #{tpu_custom_call.1} parent=5 // pred_check_branch
        %108 = sbr.rel (%p105) target = $region12
      $region11: #{tpu_custom_call.1} parent=5 // pred_region
        %s109 = ssub.s32 %s13, 1
        // Predicated region
        $region13: #{tpu_custom_call.1} parent=11 // pred_check
          %p110 = pneg %p46
        $region14: #{tpu_custom_call.1} parent=11 // pred_check_branch
          %112 = sbr.rel (%p110) target = $region16
        $region15: #{tpu_custom_call.1} parent=11 // pred_region
          %114 = vsyncadd [#allocation5], 0
          %s115 = sshll.u32 %s1, 4
          %s116 = int_to_ptr.hbm [resolvable:$true] %s115
          %s117 = sshll.u32 [#allocation4], 4
          %s118 = int_to_ptr.vmem [resolvable:$true] %s117
          %123 = dma.hbm_to_vmem [thread:$0]  %s116, 24576, %s118, [#allocation5], 128, 128, 8
        $region16: #{tpu_custom_call.1} parent=11 // pred_fallthru
          _
        // Predicated region
        $region17: #{tpu_custom_call.1} parent=11 // pred_check
          %p124 = pneg %p67
        $region18: #{tpu_custom_call.1} parent=11 // pred_check_branch
          %126 = sbr.rel (%p124) target = $region20
        $region19: #{tpu_custom_call.1} parent=11 // pred_region
          _
        $region20: #{tpu_custom_call.1} parent=11 // pred_fallthru
          _
      $region12: #{tpu_custom_call.1} parent=5 // pred_fallthru
        _
      %p127 = scmp.lt.s32.totalorder %s13, 2
      // Predicated region
      $region21: #{tpu_custom_call.1} parent=5 // pred_check
        %p128 = pneg %p127
      $region22: #{tpu_custom_call.1} parent=5 // pred_check_branch
        %130 = sbr.rel (%p128) target = $region24
      $region23: #{tpu_custom_call.1} parent=5 // pred_region
        _
      $region24: #{tpu_custom_call.1} parent=5 // pred_fallthru
        _
      %p131 = scmp.le.s32.totalorder 1, %s13
      %p132 = scmp.lt.s32.totalorder %s13, 3
      %p133 = pnand %p131, %p132
      %p134 = pneg %p133
      // Predicated region
      $region25: #{tpu_custom_call.1} parent=5 // pred_check
        _
      $region26: #{tpu_custom_call.1} parent=5 // pred_check_branch
        %136 = sbr.rel (%p133) target = $region28
      $region27: #{tpu_custom_call.1} parent=5 // pred_region
        %s137 = ssub.s32 %s13, 1
        // Predicated region
        $region29: #{tpu_custom_call.1} parent=27 // pred_check
          %p138 = pneg %p46
        $region30: #{tpu_custom_call.1} parent=27 // pred_check_branch
          %140 = sbr.rel (%p138) target = $region32
        $region31: #{tpu_custom_call.1} parent=27 // pred_region
          %142 = dma.done [#allocation5], 24576
        $region32: #{tpu_custom_call.1} parent=27 // pred_fallthru
          _
        %p143 = pneg %p46
        %p144 = pneg %p43
        %p145 = pneg %p67
        %p146 = pneg %p64
        %p147 = pneg %p95
        %p148 = pneg %p92
        %s149 = sand.u32 %s82, 1
        %s150 = scalar_lea.sflag [#allocation6], %s149
        %s151 = sand.u32 %s82, 1
        %s152 = smul.addr %s151, 16
        %s153 = scalar_lea.vmem [#allocation7], %s152
        %s154 = smul.u32 2, %s23
        %p155 = scmp.lt.s32.totalorder %s23, 0
        %s156 = ssub.s32 0, %s23
        %s157 = scalar_select %p155, %s156, %s23
        %s158 = sand.u32 %s157, 1
        %s159 = ssub.s32 0, %s158
        %s160 = scalar_select %p155, %s159, %s158
        %p161 = scmp.eq.s32.totalorder %s23, 0
        // Predicated region
        $region33: #{tpu_custom_call.1} parent=27 // pred_check
          %p162 = pneg %p161
        $region34: #{tpu_custom_call.1} parent=27 // pred_check_branch
          %164 = sbr.rel (%p162) target = $region36
        $region35: #{tpu_custom_call.1} parent=27 // pred_region
          %s165 = smul.u32 %s23, 16
          %s166 = smul.u32 %s22, 32
          %s167 = sadd.s32 %s165, %s166
          %s168 = scalar_lea.hbm %s0, %s167
          %s169 = smul.u32 %s160, 32
          %s170 = scalar_lea.vmem [#allocation2], %s169
          %s171 = scalar_lea.sflag [#allocation3], %s160
          // Predicated region
          $region37: #{tpu_custom_call.1} parent=35 // pred_check
            _
          $region38: #{tpu_custom_call.1} parent=35 // pred_check_branch
            %173 = sbr.rel target = $region40
          $region39: #{tpu_custom_call.1} parent=35 // pred_region
            %174 = sst [smem:[#allocation10]] [#allocation9]
            %175 = sst [smem:[#allocation11]] [#allocation8]
          $region40: #{tpu_custom_call.1} parent=35 // pred_fallthru
            _
          %177 = shalt.err (0)
          %s179 = sshll.u32 %s168, 4
          %s180 = int_to_ptr.hbm [resolvable:$true] %s179
          %s181 = sshll.u32 %s170, 4
          %s182 = int_to_ptr.vmem [resolvable:$true] %s181
          %184 = dma.hbm_to_vmem [thread:$0]  %s180, 512, %s182, %s171
        $region36: #{tpu_custom_call.1} parent=27 // pred_fallthru
          _
        %s185 = smul.u32 %s23, 16
        %s186 = smul.u32 %s160, 32
        %s187 = scalar_lea.vmem [#allocation2], %s186
        %s188 = scalar_lea.sflag [#allocation3], %s160
        %s189 = smul.u32 32, 1
        %s190 = sshll.u32 %s189, 4
        %191 = dma.done %s188, %s190
        %s192 = sadd.s32 %s23, 1
        %p193 = scmp.lt.s32.totalorder %s192, 1
        // Predicated region
        $region41: #{tpu_custom_call.1} parent=27 // pred_check
          %p194 = pneg %p193
        $region42: #{tpu_custom_call.1} parent=27 // pred_check_branch
          %196 = sbr.rel (%p194) target = $region44
        $region43: #{tpu_custom_call.1} parent=27 // pred_region
          %s197 = ssub.s32 1, %s160
          %s198 = smul.u32 %s192, 16
          %s199 = smul.u32 %s22, 32
          %s200 = sadd.s32 %s198, %s199
          %s201 = scalar_lea.hbm %s0, %s200
          %s202 = smul.u32 %s197, 32
          %s203 = scalar_lea.vmem [#allocation2], %s202
          %s204 = scalar_lea.sflag [#allocation3], %s197
          // Predicated region
          $region45: #{tpu_custom_call.1} parent=43 // pred_check
            _
          $region46: #{tpu_custom_call.1} parent=43 // pred_check_branch
            %206 = sbr.rel target = $region48
          $region47: #{tpu_custom_call.1} parent=43 // pred_region
            %207 = sst [smem:[#allocation10]] [#allocation13]
            %208 = sst [smem:[#allocation11]] [#allocation12]
          $region48: #{tpu_custom_call.1} parent=43 // pred_fallthru
            _
          %210 = shalt.err (0)
          %s212 = sshll.u32 %s201, 4
          %s213 = int_to_ptr.hbm [resolvable:$true] %s212
          %s214 = sshll.u32 %s203, 4
          %s215 = int_to_ptr.vmem [resolvable:$true] %s214
          %217 = dma.hbm_to_vmem [thread:$0]  %s213, 512, %s215, %s204
        $region44: #{tpu_custom_call.1} parent=27 // pred_fallthru
          _
        %v218 = vld [vmem:[%s187] sm:$0xff]
        %v219 = vld [vmem:[%s187 + $0x8] sm:$0xff]
        %v220 = vld [vmem:[%s187 + $0x10] sm:$0xff]
        %v221 = vld [vmem:[%s187 + $0x18] sm:$0xff]
        %v222 = vld [vmem:[%s2] sm:$0x1]
        %vm226 = vcmask 1046528
        %v227 = vrot.slane %v218, 1
        %v228 = vrot.slane %v219, 1
        %v229 = vsel %vm226, %v227, %v228
        %v230 = vrot.slane %v220, 1
        %v231 = vsel %vm226, %v228, %v230
        %v234 = vld [vmem:[#allocation4] sm:$0xff]
        %v235 = vld [vmem:[#allocation4 + $0x8] sm:$0xff]
        %v236 = vld [vmem:[#allocation4 + $0x10] sm:$0xff]
        %v237 = vld [vmem:[#allocation4 + $0x18] sm:$0xff]
        %v238 = vld [vmem:[#allocation4 + $0x20] sm:$0xff]
        %v239 = vld [vmem:[#allocation4 + $0x28] sm:$0xff]
        %v240 = vld [vmem:[#allocation4 + $0x30] sm:$0xff]
        %v241 = vld [vmem:[#allocation4 + $0x38] sm:$0xff]
        %v242 = vld [vmem:[#allocation4 + $0x40] sm:$0xff]
        %v243 = vld [vmem:[#allocation4 + $0x48] sm:$0xff]
        %v244 = vld [vmem:[#allocation4 + $0x50] sm:$0xff]
        %v245 = vld [vmem:[#allocation4 + $0x58] sm:$0xff]
        %v246 = vld [vmem:[#allocation4 + $0x60] sm:$0xff]
        %v247 = vld [vmem:[#allocation4 + $0x68] sm:$0xff]
        %v248 = vld [vmem:[#allocation4 + $0x70] sm:$0xff]
        %v249 = vld [vmem:[#allocation4 + $0x78] sm:$0xff]
        %v250 = vld [vmem:[#allocation4 + $0x80] sm:$0xff]
        %v251 = vld [vmem:[#allocation4 + $0x88] sm:$0xff]
        %v252 = vld [vmem:[#allocation4 + $0x90] sm:$0xff]
        %v253 = vld [vmem:[#allocation4 + $0x98] sm:$0xff]
        %v254 = vld [vmem:[#allocation4 + $0xa0] sm:$0xff]
        %v255 = vld [vmem:[#allocation4 + $0xa8] sm:$0xff]
        %v256 = vld [vmem:[#allocation4 + $0xb0] sm:$0xff]
        %v257 = vld [vmem:[#allocation4 + $0xb8] sm:$0xff]
        %v258 = vld [vmem:[#allocation4 + $0xc0] sm:$0xff]
        %v259 = vld [vmem:[#allocation4 + $0xc8] sm:$0xff]
        %v260 = vld [vmem:[#allocation4 + $0xd0] sm:$0xff]
        %v261 = vld [vmem:[#allocation4 + $0xd8] sm:$0xff]
        %v262 = vld [vmem:[#allocation4 + $0xe0] sm:$0xff]
        %v263 = vld [vmem:[#allocation4 + $0xe8] sm:$0xff]
        %v264 = vld [vmem:[#allocation4 + $0xf0] sm:$0xff]
        %v265 = vld [vmem:[#allocation4 + $0xf8] sm:$0xff]
        %266 = vmatpush.msra.mxu0 %v249
        %267 = vmatpush.msra.mxu0 %v248
        %268 = vmatpush.msra.mxu0 %v247
        %269 = vmatpush.msra.mxu0 %v246
        %270 = vmatpush.msra.mxu0 %v245
        %271 = vmatpush.msra.mxu0 %v244
        %272 = vmatpush.msra.mxu0 %v243
        %273 = vmatpush.msra.mxu0 %v242
        %274 = vmatpush.msra.mxu0 %v241
        %275 = vmatpush.msra.mxu0 %v240
        %276 = vmatpush.msra.mxu0 %v239
        %277 = vmatpush.msra.mxu0 %v238
        %278 = vmatpush.msra.mxu0 %v237
        %279 = vmatpush.msra.mxu0 %v236
        %280 = vmatpush.msra.mxu0 %v235
        %281 = vmatpush.msra.mxu0 %v234
        %282 = vmatmul.f32.gmra.mxu0 %v218
        %v283 = vpop.f32.mrf.mxu0
        %v284 = vadd.f32 0.0, %v283
        %285 = vmatmul.f32.gmra.mxu0 %v219
        %v286 = vpop.f32.mrf.mxu0
        %v287 = vadd.f32 0.0, %v286
        %288 = vdwg.mxu0
        %289 = vmatpush.msra.mxu0 %v265
        %290 = vmatpush.msra.mxu0 %v264
        %291 = vmatpush.msra.mxu0 %v263
        %292 = vmatpush.msra.mxu0 %v262
        %293 = vmatpush.msra.mxu0 %v261
        %294 = vmatpush.msra.mxu0 %v260
        %295 = vmatpush.msra.mxu0 %v259
        %296 = vmatpush.msra.mxu0 %v258
        %297 = vmatpush.msra.mxu0 %v257
        %298 = vmatpush.msra.mxu0 %v256
        %299 = vmatpush.msra.mxu0 %v255
        %300 = vmatpush.msra.mxu0 %v254
        %301 = vmatpush.msra.mxu0 %v253
        %302 = vmatpush.msra.mxu0 %v252
        %303 = vmatpush.msra.mxu0 %v251
        %304 = vmatpush.msra.mxu0 %v250
        %305 = vmatmul.f32.gmra.mxu0 %v229
        %v306 = vpop.f32.mrf.mxu0
        %v307 = vadd.f32 %v284, %v306
        %308 = vmatmul.f32.gmra.mxu0 %v231
        %v309 = vpop.f32.mrf.mxu0
        %v310 = vadd.f32 %v287, %v309
        %311 = vdwg.mxu0
        %v313 = vperm.slane %v222, 0
        %v315 = vadd.f32 %v313, %v307
        %v316 = vadd.f32 %v313, %v310
        %317 = vst [vmem:[%s153] sm:$0xff] %v315
        %318 = vst [vmem:[%s153 + $0x8] sm:$0xff] %v316
        %v319 = vld [vmem:[%s153] sm:$0xff]
        %v320 = vld [vmem:[%s153 + $0x8] sm:$0xff]
        %s321 = scalar_lea.vmem [#allocation4], 256
        %v322 = vld [vmem:[%s321] sm:$0xff]
        %v323 = vld [vmem:[%s321 + $0x8] sm:$0xff]
        %v324 = vld [vmem:[%s321 + $0x10] sm:$0xff]
        %v325 = vld [vmem:[%s321 + $0x18] sm:$0xff]
        %v326 = vld [vmem:[%s321 + $0x20] sm:$0xff]
        %v327 = vld [vmem:[%s321 + $0x28] sm:$0xff]
        %v328 = vld [vmem:[%s321 + $0x30] sm:$0xff]
        %v329 = vld [vmem:[%s321 + $0x38] sm:$0xff]
        %v330 = vld [vmem:[%s321 + $0x40] sm:$0xff]
        %v331 = vld [vmem:[%s321 + $0x48] sm:$0xff]
        %v332 = vld [vmem:[%s321 + $0x50] sm:$0xff]
        %v333 = vld [vmem:[%s321 + $0x58] sm:$0xff]
        %v334 = vld [vmem:[%s321 + $0x60] sm:$0xff]
        %v335 = vld [vmem:[%s321 + $0x68] sm:$0xff]
        %v336 = vld [vmem:[%s321 + $0x70] sm:$0xff]
        %v337 = vld [vmem:[%s321 + $0x78] sm:$0xff]
        %v338 = vld [vmem:[%s321 + $0x80] sm:$0xff]
        %v339 = vld [vmem:[%s321 + $0x88] sm:$0xff]
        %v340 = vld [vmem:[%s321 + $0x90] sm:$0xff]
        %v341 = vld [vmem:[%s321 + $0x98] sm:$0xff]
        %v342 = vld [vmem:[%s321 + $0xa0] sm:$0xff]
        %v343 = vld [vmem:[%s321 + $0xa8] sm:$0xff]
        %v344 = vld [vmem:[%s321 + $0xb0] sm:$0xff]
        %v345 = vld [vmem:[%s321 + $0xb8] sm:$0xff]
        %v346 = vld [vmem:[%s321 + $0xc0] sm:$0xff]
        %v347 = vld [vmem:[%s321 + $0xc8] sm:$0xff]
        %v348 = vld [vmem:[%s321 + $0xd0] sm:$0xff]
        %v349 = vld [vmem:[%s321 + $0xd8] sm:$0xff]
        %v350 = vld [vmem:[%s321 + $0xe0] sm:$0xff]
        %v351 = vld [vmem:[%s321 + $0xe8] sm:$0xff]
        %v352 = vld [vmem:[%s321 + $0xf0] sm:$0xff]
        %v353 = vld [vmem:[%s321 + $0xf8] sm:$0xff]
        %vm354 = vcmask 1045504
        %v355 = vrot.slane %v218, 2
        %v356 = vrot.slane %v219, 2
        %v357 = vsel %vm354, %v355, %v356
        %v358 = vrot.slane %v229, 2
        %v359 = vrot.slane %v231, 2
        %v360 = vsel %vm354, %v358, %v359
        %v361 = vrot.slane %v220, 2
        %v362 = vsel %vm354, %v356, %v361
        %v363 = vrot.slane %v230, 2
        %v364 = vsel %vm354, %v359, %v363
        %369 = vmatpush.msra.mxu0 %v337
        %370 = vmatpush.msra.mxu0 %v336
        %371 = vmatpush.msra.mxu0 %v335
        %372 = vmatpush.msra.mxu0 %v334
        %373 = vmatpush.msra.mxu0 %v333
        %374 = vmatpush.msra.mxu0 %v332
        %375 = vmatpush.msra.mxu0 %v331
        %376 = vmatpush.msra.mxu0 %v330
        %377 = vmatpush.msra.mxu0 %v329
        %378 = vmatpush.msra.mxu0 %v328
        %379 = vmatpush.msra.mxu0 %v327
        %380 = vmatpush.msra.mxu0 %v326
        %381 = vmatpush.msra.mxu0 %v325
        %382 = vmatpush.msra.mxu0 %v324
        %383 = vmatpush.msra.mxu0 %v323
        %384 = vmatpush.msra.mxu0 %v322
        %385 = vmatmul.f32.gmra.mxu0 %v357
        %v386 = vpop.f32.mrf.mxu0
        %v387 = vadd.f32 0.0, %v386
        %388 = vmatmul.f32.gmra.mxu0 %v362
        %v389 = vpop.f32.mrf.mxu0
        %v390 = vadd.f32 0.0, %v389
        %391 = vdwg.mxu0
        %392 = vmatpush.msra.mxu0 %v353
        %393 = vmatpush.msra.mxu0 %v352
        %394 = vmatpush.msra.mxu0 %v351
        %395 = vmatpush.msra.mxu0 %v350
        %396 = vmatpush.msra.mxu0 %v349
        %397 = vmatpush.msra.mxu0 %v348
        %398 = vmatpush.msra.mxu0 %v347
        %399 = vmatpush.msra.mxu0 %v346
        %400 = vmatpush.msra.mxu0 %v345
        %401 = vmatpush.msra.mxu0 %v344
        %402 = vmatpush.msra.mxu0 %v343
        %403 = vmatpush.msra.mxu0 %v342
        %404 = vmatpush.msra.mxu0 %v341
        %405 = vmatpush.msra.mxu0 %v340
        %406 = vmatpush.msra.mxu0 %v339
        %407 = vmatpush.msra.mxu0 %v338
        %408 = vmatmul.f32.gmra.mxu0 %v360
        %v409 = vpop.f32.mrf.mxu0
        %v410 = vadd.f32 %v387, %v409
        %411 = vmatmul.f32.gmra.mxu0 %v364
        %v412 = vpop.f32.mrf.mxu0
        %v413 = vadd.f32 %v390, %v412
        %414 = vdwg.mxu0
        %v415 = vadd.f32 %v319, %v410
        %v416 = vadd.f32 %v320, %v413
        %417 = vst [vmem:[%s153] sm:$0xff] %v415
        %418 = vst [vmem:[%s153 + $0x8] sm:$0xff] %v416
        %v419 = vld [vmem:[%s153] sm:$0xff]
        %v420 = vld [vmem:[%s153 + $0x8] sm:$0xff]
        %s421 = scalar_lea.vmem [#allocation4], 512
        %v422 = vld [vmem:[%s421] sm:$0xff]
        %v423 = vld [vmem:[%s421 + $0x8] sm:$0xff]
        %v424 = vld [vmem:[%s421 + $0x10] sm:$0xff]
        %v425 = vld [vmem:[%s421 + $0x18] sm:$0xff]
        %v426 = vld [vmem:[%s421 + $0x20] sm:$0xff]
        %v427 = vld [vmem:[%s421 + $0x28] sm:$0xff]
        %v428 = vld [vmem:[%s421 + $0x30] sm:$0xff]
        %v429 = vld [vmem:[%s421 + $0x38] sm:$0xff]
        %v430 = vld [vmem:[%s421 + $0x40] sm:$0xff]
        %v431 = vld [vmem:[%s421 + $0x48] sm:$0xff]
        %v432 = vld [vmem:[%s421 + $0x50] sm:$0xff]
        %v433 = vld [vmem:[%s421 + $0x58] sm:$0xff]
        %v434 = vld [vmem:[%s421 + $0x60] sm:$0xff]
        %v435 = vld [vmem:[%s421 + $0x68] sm:$0xff]
        %v436 = vld [vmem:[%s421 + $0x70] sm:$0xff]
        %v437 = vld [vmem:[%s421 + $0x78] sm:$0xff]
        %v438 = vld [vmem:[%s421 + $0x80] sm:$0xff]
        %v439 = vld [vmem:[%s421 + $0x88] sm:$0xff]
        %v440 = vld [vmem:[%s421 + $0x90] sm:$0xff]
        %v441 = vld [vmem:[%s421 + $0x98] sm:$0xff]
        %v442 = vld [vmem:[%s421 + $0xa0] sm:$0xff]
        %v443 = vld [vmem:[%s421 + $0xa8] sm:$0xff]
        %v444 = vld [vmem:[%s421 + $0xb0] sm:$0xff]
        %v445 = vld [vmem:[%s421 + $0xb8] sm:$0xff]
        %v446 = vld [vmem:[%s421 + $0xc0] sm:$0xff]
        %v447 = vld [vmem:[%s421 + $0xc8] sm:$0xff]
        %v448 = vld [vmem:[%s421 + $0xd0] sm:$0xff]
        %v449 = vld [vmem:[%s421 + $0xd8] sm:$0xff]
        %v450 = vld [vmem:[%s421 + $0xe0] sm:$0xff]
        %v451 = vld [vmem:[%s421 + $0xe8] sm:$0xff]
        %v452 = vld [vmem:[%s421 + $0xf0] sm:$0xff]
        %v453 = vld [vmem:[%s421 + $0xf8] sm:$0xff]
        %vm454 = vcmask 1043456
        %v455 = vrot.slane %v218, 4
        %v456 = vrot.slane %v219, 4
        %v457 = vsel %vm454, %v455, %v456
        %v458 = vrot.slane %v229, 4
        %v459 = vrot.slane %v231, 4
        %v460 = vsel %vm454, %v458, %v459
        %v461 = vrot.slane %v220, 4
        %v462 = vsel %vm454, %v456, %v461
        %v463 = vrot.slane %v230, 4
        %v464 = vsel %vm454, %v459, %v463
        %469 = vmatpush.msra.mxu0 %v437
        %470 = vmatpush.msra.mxu0 %v436
        %471 = vmatpush.msra.mxu0 %v435
        %472 = vmatpush.msra.mxu0 %v434
        %473 = vmatpush.msra.mxu0 %v433
        %474 = vmatpush.msra.mxu0 %v432
        %475 = vmatpush.msra.mxu0 %v431
        %476 = vmatpush.msra.mxu0 %v430
        %477 = vmatpush.msra.mxu0 %v429
        %478 = vmatpush.msra.mxu0 %v428
        %479 = vmatpush.msra.mxu0 %v427
        %480 = vmatpush.msra.mxu0 %v426
        %481 = vmatpush.msra.mxu0 %v425
        %482 = vmatpush.msra.mxu0 %v424
        %483 = vmatpush.msra.mxu0 %v423
        %484 = vmatpush.msra.mxu0 %v422
        %485 = vmatmul.f32.gmra.mxu0 %v457
        %v486 = vpop.f32.mrf.mxu0
        %v487 = vadd.f32 0.0, %v486
        %488 = vmatmul.f32.gmra.mxu0 %v462
        %v489 = vpop.f32.mrf.mxu0
        %v490 = vadd.f32 0.0, %v489
        %491 = vdwg.mxu0
        %492 = vmatpush.msra.mxu0 %v453
        %493 = vmatpush.msra.mxu0 %v452
        %494 = vmatpush.msra.mxu0 %v451
        %495 = vmatpush.msra.mxu0 %v450
        %496 = vmatpush.msra.mxu0 %v449
        %497 = vmatpush.msra.mxu0 %v448
        %498 = vmatpush.msra.mxu0 %v447
        %499 = vmatpush.msra.mxu0 %v446
        %500 = vmatpush.msra.mxu0 %v445
        %501 = vmatpush.msra.mxu0 %v444
        %502 = vmatpush.msra.mxu0 %v443
        %503 = vmatpush.msra.mxu0 %v442
        %504 = vmatpush.msra.mxu0 %v441
        %505 = vmatpush.msra.mxu0 %v440
        %506 = vmatpush.msra.mxu0 %v439
        %507 = vmatpush.msra.mxu0 %v438
        %508 = vmatmul.f32.gmra.mxu0 %v460
        %v509 = vpop.f32.mrf.mxu0
        %v510 = vadd.f32 %v487, %v509
        %511 = vmatmul.f32.gmra.mxu0 %v464
        %v512 = vpop.f32.mrf.mxu0
        %v513 = vadd.f32 %v490, %v512
        %514 = vdwg.mxu0
        %v515 = vadd.f32 %v419, %v510
        %v516 = vadd.f32 %v420, %v513
        %517 = vst [vmem:[%s153] sm:$0xff] %v515
        %518 = vst [vmem:[%s153 + $0x8] sm:$0xff] %v516
        %v519 = vld [vmem:[%s153] sm:$0xff]
        %v520 = vld [vmem:[%s153 + $0x8] sm:$0xff]
        %s521 = scalar_lea.vmem [#allocation4], 768
        %v522 = vld [vmem:[%s521] sm:$0xff]
        %v523 = vld [vmem:[%s521 + $0x8] sm:$0xff]
        %v524 = vld [vmem:[%s521 + $0x10] sm:$0xff]
        %v525 = vld [vmem:[%s521 + $0x18] sm:$0xff]
        %v526 = vld [vmem:[%s521 + $0x20] sm:$0xff]
        %v527 = vld [vmem:[%s521 + $0x28] sm:$0xff]
        %v528 = vld [vmem:[%s521 + $0x30] sm:$0xff]
        %v529 = vld [vmem:[%s521 + $0x38] sm:$0xff]
        %v530 = vld [vmem:[%s521 + $0x40] sm:$0xff]
        %v531 = vld [vmem:[%s521 + $0x48] sm:$0xff]
        %v532 = vld [vmem:[%s521 + $0x50] sm:$0xff]
        %v533 = vld [vmem:[%s521 + $0x58] sm:$0xff]
        %v534 = vld [vmem:[%s521 + $0x60] sm:$0xff]
        %v535 = vld [vmem:[%s521 + $0x68] sm:$0xff]
        %v536 = vld [vmem:[%s521 + $0x70] sm:$0xff]
        %v537 = vld [vmem:[%s521 + $0x78] sm:$0xff]
        %v538 = vld [vmem:[%s521 + $0x80] sm:$0xff]
        %v539 = vld [vmem:[%s521 + $0x88] sm:$0xff]
        %v540 = vld [vmem:[%s521 + $0x90] sm:$0xff]
        %v541 = vld [vmem:[%s521 + $0x98] sm:$0xff]
        %v542 = vld [vmem:[%s521 + $0xa0] sm:$0xff]
        %v543 = vld [vmem:[%s521 + $0xa8] sm:$0xff]
        %v544 = vld [vmem:[%s521 + $0xb0] sm:$0xff]
        %v545 = vld [vmem:[%s521 + $0xb8] sm:$0xff]
        %v546 = vld [vmem:[%s521 + $0xc0] sm:$0xff]
        %v547 = vld [vmem:[%s521 + $0xc8] sm:$0xff]
        %v548 = vld [vmem:[%s521 + $0xd0] sm:$0xff]
        %v549 = vld [vmem:[%s521 + $0xd8] sm:$0xff]
        %v550 = vld [vmem:[%s521 + $0xe0] sm:$0xff]
        %v551 = vld [vmem:[%s521 + $0xe8] sm:$0xff]
        %v552 = vld [vmem:[%s521 + $0xf0] sm:$0xff]
        %v553 = vld [vmem:[%s521 + $0xf8] sm:$0xff]
        %vm554 = vcmask 1041408
        %v555 = vrot.slane %v218, 6
        %v556 = vrot.slane %v219, 6
        %v557 = vsel %vm554, %v555, %v556
        %v558 = vrot.slane %v229, 6
        %v559 = vrot.slane %v231, 6
        %v560 = vsel %vm554, %v558, %v559
        %v561 = vrot.slane %v220, 6
        %v562 = vsel %vm554, %v556, %v561
        %v563 = vrot.slane %v230, 6
        %v564 = vsel %vm554, %v559, %v563
        %569 = vmatpush.msra.mxu0 %v537
        %570 = vmatpush.msra.mxu0 %v536
        %571 = vmatpush.msra.mxu0 %v535
        %572 = vmatpush.msra.mxu0 %v534
        %573 = vmatpush.msra.mxu0 %v533
        %574 = vmatpush.msra.mxu0 %v532
        %575 = vmatpush.msra.mxu0 %v531
        %576 = vmatpush.msra.mxu0 %v530
        %577 = vmatpush.msra.mxu0 %v529
        %578 = vmatpush.msra.mxu0 %v528
        %579 = vmatpush.msra.mxu0 %v527
        %580 = vmatpush.msra.mxu0 %v526
        %581 = vmatpush.msra.mxu0 %v525
        %582 = vmatpush.msra.mxu0 %v524
        %583 = vmatpush.msra.mxu0 %v523
        %584 = vmatpush.msra.mxu0 %v522
        %585 = vmatmul.f32.gmra.mxu0 %v557
        %v586 = vpop.f32.mrf.mxu0
        %v587 = vadd.f32 0.0, %v586
        %588 = vmatmul.f32.gmra.mxu0 %v562
        %v589 = vpop.f32.mrf.mxu0
        %v590 = vadd.f32 0.0, %v589
        %591 = vdwg.mxu0
        %592 = vmatpush.msra.mxu0 %v553
        %593 = vmatpush.msra.mxu0 %v552
        %594 = vmatpush.msra.mxu0 %v551
        %595 = vmatpush.msra.mxu0 %v550
        %596 = vmatpush.msra.mxu0 %v549
        %597 = vmatpush.msra.mxu0 %v548
        %598 = vmatpush.msra.mxu0 %v547
        %599 = vmatpush.msra.mxu0 %v546
        %600 = vmatpush.msra.mxu0 %v545
        %601 = vmatpush.msra.mxu0 %v544
        %602 = vmatpush.msra.mxu0 %v543
        %603 = vmatpush.msra.mxu0 %v542
        %604 = vmatpush.msra.mxu0 %v541
        %605 = vmatpush.msra.mxu0 %v540
        %606 = vmatpush.msra.mxu0 %v539
        %607 = vmatpush.msra.mxu0 %v538
        %608 = vmatmul.f32.gmra.mxu0 %v560
        %v609 = vpop.f32.mrf.mxu0
        %v610 = vadd.f32 %v587, %v609
        %611 = vmatmul.f32.gmra.mxu0 %v564
        %v612 = vpop.f32.mrf.mxu0
        %v613 = vadd.f32 %v590, %v612
        %614 = vdwg.mxu0
        %v615 = vadd.f32 %v519, %v610
        %v616 = vadd.f32 %v520, %v613
        %617 = vst [vmem:[%s153] sm:$0xff] %v615
        %618 = vst [vmem:[%s153 + $0x8] sm:$0xff] %v616
        %v619 = vld [vmem:[%s153] sm:$0xff]
        %v620 = vld [vmem:[%s153 + $0x8] sm:$0xff]
        %v622 = vrot.slane %v221, 1
        %v623 = vsel %vm226, %v230, %v622
        %s625 = scalar_lea.vmem [#allocation4], 1024
        %v626 = vld [vmem:[%s625] sm:$0xff]
        %v627 = vld [vmem:[%s625 + $0x8] sm:$0xff]
        %v628 = vld [vmem:[%s625 + $0x10] sm:$0xff]
        %v629 = vld [vmem:[%s625 + $0x18] sm:$0xff]
        %v630 = vld [vmem:[%s625 + $0x20] sm:$0xff]
        %v631 = vld [vmem:[%s625 + $0x28] sm:$0xff]
        %v632 = vld [vmem:[%s625 + $0x30] sm:$0xff]
        %v633 = vld [vmem:[%s625 + $0x38] sm:$0xff]
        %v634 = vld [vmem:[%s625 + $0x40] sm:$0xff]
        %v635 = vld [vmem:[%s625 + $0x48] sm:$0xff]
        %v636 = vld [vmem:[%s625 + $0x50] sm:$0xff]
        %v637 = vld [vmem:[%s625 + $0x58] sm:$0xff]
        %v638 = vld [vmem:[%s625 + $0x60] sm:$0xff]
        %v639 = vld [vmem:[%s625 + $0x68] sm:$0xff]
        %v640 = vld [vmem:[%s625 + $0x70] sm:$0xff]
        %v641 = vld [vmem:[%s625 + $0x78] sm:$0xff]
        %v642 = vld [vmem:[%s625 + $0x80] sm:$0xff]
        %v643 = vld [vmem:[%s625 + $0x88] sm:$0xff]
        %v644 = vld [vmem:[%s625 + $0x90] sm:$0xff]
        %v645 = vld [vmem:[%s625 + $0x98] sm:$0xff]
        %v646 = vld [vmem:[%s625 + $0xa0] sm:$0xff]
        %v647 = vld [vmem:[%s625 + $0xa8] sm:$0xff]
        %v648 = vld [vmem:[%s625 + $0xb0] sm:$0xff]
        %v649 = vld [vmem:[%s625 + $0xb8] sm:$0xff]
        %v650 = vld [vmem:[%s625 + $0xc0] sm:$0xff]
        %v651 = vld [vmem:[%s625 + $0xc8] sm:$0xff]
        %v652 = vld [vmem:[%s625 + $0xd0] sm:$0xff]
        %v653 = vld [vmem:[%s625 + $0xd8] sm:$0xff]
        %v654 = vld [vmem:[%s625 + $0xe0] sm:$0xff]
        %v655 = vld [vmem:[%s625 + $0xe8] sm:$0xff]
        %v656 = vld [vmem:[%s625 + $0xf0] sm:$0xff]
        %v657 = vld [vmem:[%s625 + $0xf8] sm:$0xff]
        %658 = vmatpush.msra.mxu0 %v641
        %659 = vmatpush.msra.mxu0 %v640
        %660 = vmatpush.msra.mxu0 %v639
        %661 = vmatpush.msra.mxu0 %v638
        %662 = vmatpush.msra.mxu0 %v637
        %663 = vmatpush.msra.mxu0 %v636
        %664 = vmatpush.msra.mxu0 %v635
        %665 = vmatpush.msra.mxu0 %v634
        %666 = vmatpush.msra.mxu0 %v633
        %667 = vmatpush.msra.mxu0 %v632
        %668 = vmatpush.msra.mxu0 %v631
        %669 = vmatpush.msra.mxu0 %v630
        %670 = vmatpush.msra.mxu0 %v629
        %671 = vmatpush.msra.mxu0 %v628
        %672 = vmatpush.msra.mxu0 %v627
        %673 = vmatpush.msra.mxu0 %v626
        %674 = vmatmul.f32.gmra.mxu0 %v219
        %v675 = vpop.f32.mrf.mxu0
        %v676 = vadd.f32 0.0, %v675
        %677 = vmatmul.f32.gmra.mxu0 %v220
        %v678 = vpop.f32.mrf.mxu0
        %v679 = vadd.f32 0.0, %v678
        %680 = vdwg.mxu0
        %681 = vmatpush.msra.mxu0 %v657
        %682 = vmatpush.msra.mxu0 %v656
        %683 = vmatpush.msra.mxu0 %v655
        %684 = vmatpush.msra.mxu0 %v654
        %685 = vmatpush.msra.mxu0 %v653
        %686 = vmatpush.msra.mxu0 %v652
        %687 = vmatpush.msra.mxu0 %v651
        %688 = vmatpush.msra.mxu0 %v650
        %689 = vmatpush.msra.mxu0 %v649
        %690 = vmatpush.msra.mxu0 %v648
        %691 = vmatpush.msra.mxu0 %v647
        %692 = vmatpush.msra.mxu0 %v646
        %693 = vmatpush.msra.mxu0 %v645
        %694 = vmatpush.msra.mxu0 %v644
        %695 = vmatpush.msra.mxu0 %v643
        %696 = vmatpush.msra.mxu0 %v642
        %697 = vmatmul.f32.gmra.mxu0 %v231
        %v698 = vpop.f32.mrf.mxu0
        %v699 = vadd.f32 %v676, %v698
        %700 = vmatmul.f32.gmra.mxu0 %v623
        %v701 = vpop.f32.mrf.mxu0
        %v702 = vadd.f32 %v679, %v701
        %703 = vdwg.mxu0
        %v704 = vadd.f32 %v619, %v699
        %v705 = vadd.f32 %v620, %v702
        %706 = vst [vmem:[%s153] sm:$0xff] %v704
        %707 = vst [vmem:[%s153 + $0x8] sm:$0xff] %v705
        %v708 = vld [vmem:[%s153] sm:$0xff]
        %v709 = vld [vmem:[%s153 + $0x8] sm:$0xff]
        %s710 = scalar_lea.vmem [#allocation4], 1280
        %v711 = vld [vmem:[%s710] sm:$0xff]
        %v712 = vld [vmem:[%s710 + $0x8] sm:$0xff]
        %v713 = vld [vmem:[%s710 + $0x10] sm:$0xff]
        %v714 = vld [vmem:[%s710 + $0x18] sm:$0xff]
        %v715 = vld [vmem:[%s710 + $0x20] sm:$0xff]
        %v716 = vld [vmem:[%s710 + $0x28] sm:$0xff]
        %v717 = vld [vmem:[%s710 + $0x30] sm:$0xff]
        %v718 = vld [vmem:[%s710 + $0x38] sm:$0xff]
        %v719 = vld [vmem:[%s710 + $0x40] sm:$0xff]
        %v720 = vld [vmem:[%s710 + $0x48] sm:$0xff]
        %v721 = vld [vmem:[%s710 + $0x50] sm:$0xff]
        %v722 = vld [vmem:[%s710 + $0x58] sm:$0xff]
        %v723 = vld [vmem:[%s710 + $0x60] sm:$0xff]
        %v724 = vld [vmem:[%s710 + $0x68] sm:$0xff]
        %v725 = vld [vmem:[%s710 + $0x70] sm:$0xff]
        %v726 = vld [vmem:[%s710 + $0x78] sm:$0xff]
        %v727 = vld [vmem:[%s710 + $0x80] sm:$0xff]
        %v728 = vld [vmem:[%s710 + $0x88] sm:$0xff]
        %v729 = vld [vmem:[%s710 + $0x90] sm:$0xff]
        %v730 = vld [vmem:[%s710 + $0x98] sm:$0xff]
        %v731 = vld [vmem:[%s710 + $0xa0] sm:$0xff]
        %v732 = vld [vmem:[%s710 + $0xa8] sm:$0xff]
        %v733 = vld [vmem:[%s710 + $0xb0] sm:$0xff]
        %v734 = vld [vmem:[%s710 + $0xb8] sm:$0xff]
        %v735 = vld [vmem:[%s710 + $0xc0] sm:$0xff]
        %v736 = vld [vmem:[%s710 + $0xc8] sm:$0xff]
        %v737 = vld [vmem:[%s710 + $0xd0] sm:$0xff]
        %v738 = vld [vmem:[%s710 + $0xd8] sm:$0xff]
        %v739 = vld [vmem:[%s710 + $0xe0] sm:$0xff]
        %v740 = vld [vmem:[%s710 + $0xe8] sm:$0xff]
        %v741 = vld [vmem:[%s710 + $0xf0] sm:$0xff]
        %v742 = vld [vmem:[%s710 + $0xf8] sm:$0xff]
        %v743 = vrot.slane %v623, 2
        %v744 = vsel %vm354, %v359, %v743
        %v745 = vrot.slane %v221, 2
        %v746 = vsel %vm354, %v361, %v745
        %v747 = vrot.slane %v622, 2
        %v748 = vsel %vm354, %v743, %v747
        %752 = vmatpush.msra.mxu0 %v726
        %753 = vmatpush.msra.mxu0 %v725
        %754 = vmatpush.msra.mxu0 %v724
        %755 = vmatpush.msra.mxu0 %v723
        %756 = vmatpush.msra.mxu0 %v722
        %757 = vmatpush.msra.mxu0 %v721
        %758 = vmatpush.msra.mxu0 %v720
        %759 = vmatpush.msra.mxu0 %v719
        %760 = vmatpush.msra.mxu0 %v718
        %761 = vmatpush.msra.mxu0 %v717
        %762 = vmatpush.msra.mxu0 %v716
        %763 = vmatpush.msra.mxu0 %v715
        %764 = vmatpush.msra.mxu0 %v714
        %765 = vmatpush.msra.mxu0 %v713
        %766 = vmatpush.msra.mxu0 %v712
        %767 = vmatpush.msra.mxu0 %v711
        %768 = vmatmul.f32.gmra.mxu0 %v362
        %v769 = vpop.f32.mrf.mxu0
        %v770 = vadd.f32 0.0, %v769
        %771 = vmatmul.f32.gmra.mxu0 %v746
        %v772 = vpop.f32.mrf.mxu0
        %v773 = vadd.f32 0.0, %v772
        %774 = vdwg.mxu0
        %775 = vmatpush.msra.mxu0 %v742
        %776 = vmatpush.msra.mxu0 %v741
        %777 = vmatpush.msra.mxu0 %v740
        %778 = vmatpush.msra.mxu0 %v739
        %779 = vmatpush.msra.mxu0 %v738
        %780 = vmatpush.msra.mxu0 %v737
        %781 = vmatpush.msra.mxu0 %v736
        %782 = vmatpush.msra.mxu0 %v735
        %783 = vmatpush.msra.mxu0 %v734
        %784 = vmatpush.msra.mxu0 %v733
        %785 = vmatpush.msra.mxu0 %v732
        %786 = vmatpush.msra.mxu0 %v731
        %787 = vmatpush.msra.mxu0 %v730
        %788 = vmatpush.msra.mxu0 %v729
        %789 = vmatpush.msra.mxu0 %v728
        %790 = vmatpush.msra.mxu0 %v727
        %791 = vmatmul.f32.gmra.mxu0 %v744
        %v792 = vpop.f32.mrf.mxu0
        %v793 = vadd.f32 %v770, %v792
        %794 = vmatmul.f32.gmra.mxu0 %v748
        %v795 = vpop.f32.mrf.mxu0
        %v796 = vadd.f32 %v773, %v795
        %797 = vdwg.mxu0
        %v798 = vadd.f32 %v708, %v793
        %v799 = vadd.f32 %v709, %v796
        %800 = vst [vmem:[%s153] sm:$0xff] %v798
        %801 = vst [vmem:[%s153 + $0x8] sm:$0xff] %v799
        %s802 = sand.u32 %s82, 1
        %s803 = scalar_lea.sflag [#allocation6], %s802
        %s804 = sand.u32 %s82, 1
        %s805 = smul.addr %s804, 16
        %s806 = scalar_lea.vmem [#allocation7], %s805
        // Predicated region
        $region49: #{tpu_custom_call.1} parent=27 // pred_check
          %p807 = pneg %p92
        $region50: #{tpu_custom_call.1} parent=27 // pred_check_branch
          %809 = sbr.rel (%p807) target = $region52
        $region51: #{tpu_custom_call.1} parent=27 // pred_region
          %s810 = smul.u32 2, %s23
          %812 = vsyncadd %s803, 0
          %s813 = smul.addr %s22, 2
          %s814 = sadd.s32 %s810, %s813
          %s815 = smul.addr %s814, 8
          %s816 = scalar_lea.hbm %s3, %s815
          %s817 = sshll.u32 %s806, 4
          %s818 = int_to_ptr.vmem [resolvable:$true] %s817
          %s819 = sshll.u32 %s816, 4
          %s820 = int_to_ptr.hbm [resolvable:$true] %s819
          %825 = dma.vmem_to_hbm [thread:$0]  %s818, 256, %s820, %s803, 128, 128, 8
        $region52: #{tpu_custom_call.1} parent=27 // pred_fallthru
          _
      $region28: #{tpu_custom_call.1} parent=5 // pred_fallthru
        _
      %p826 = scmp.le.s32.totalorder 2, %s13
      // Predicated region
      $region53: #{tpu_custom_call.1} parent=5 // pred_check
        %p827 = pneg %p826
      $region54: #{tpu_custom_call.1} parent=5 // pred_check_branch
        %829 = sbr.rel (%p827) target = $region56
      $region55: #{tpu_custom_call.1} parent=5 // pred_region
        %s830 = ssub.s32 %s13, 2
        // Predicated region
        $region57: #{tpu_custom_call.1} parent=55 // pred_check
          %p831 = pneg %p98
        $region58: #{tpu_custom_call.1} parent=55 // pred_check_branch
          %833 = sbr.rel (%p831) target = $region60
        $region59: #{tpu_custom_call.1} parent=55 // pred_region
          %s834 = sand.u32 %s83, 1
          %s835 = scalar_lea.sflag [#allocation6], %s834
          %s836 = sand.u32 %s83, 1
          %s837 = smul.addr %s836, 16
          %s838 = scalar_lea.vmem [#allocation7], %s837
          %840 = dma.done %s835, 256
        $region60: #{tpu_custom_call.1} parent=55 // pred_fallthru
          _
      $region56: #{tpu_custom_call.1} parent=5 // pred_fallthru
        _
    $region6: #{tpu_custom_call.1} parent=1 // loop_footer
      %s17 = sadd.s32 1, %s13
    $region7: #{tpu_custom_call.1} parent=1 // loop_footer_branch
      %12 = sbr.rel target = $region3
    $region8: #{tpu_custom_call.1} parent=1 // loop_exit
      _
    %841 = vsyncpa [#allocation5], 1
    %s842 = scalar_lea.sflag [#allocation5], 1
    %843 = vsyncpa %s842, 1
    %844 = vsyncpa [#allocation6], 1
    %s845 = scalar_lea.sflag [#allocation6], 1
    %846 = vsyncpa %s845, 1
  %847 = vsyncmov [#allocation3]
  %s848 = vpop.sfrf %847
  %p849 = scmp.eq.s32.totalorder %s848, 0
  %p850 = pneg %p849
  %852 = shalt.err (%p850)
  %s853 = scalar_lea.sflag [#allocation3], 1
  %854 = vsyncmov %s853
  %s855 = vpop.sfrf %854
  %p856 = scmp.eq.s32.totalorder %s855, 0
  %p857 = pneg %p856
  %859 = shalt.err (%p857)

// kernel: tpu_custom_call.1
$region0: #{tpu_custom_call.1}
  #allocation0 [shape = 'u32[]', space=smem, size = 0x4, offset = 0x4, fixed_abs, tag = 'smem constant byte address 0x4 - core index']
  #allocation1 [shape = 'u32[72,128]{1,0:T(1,128)}', space=vmem, size = 0x9000, scoped, tag = 'internal scratch']
  #allocation2 [shape = 'f32[2,32,128]{2,1,0:T(8,128)}', space=vmem, size = 0x8000, scoped, tag = 'scratch operand']
  #allocation3 [shape = 's32[2]{0}', space=sflag, size = 0x8, scoped, tag = 'scratch operand']
  #allocation8 [shape = 's32[]', space=sflag, size = 0x4, offset = 0, fixed_abs, tag = 'sflag constant byte address 0x0 - dummy sync flag']
  #allocation9 [shape = 's32[]', space=sflag, size = 0x4, offset = 0, fixed_abs, tag = 'sflag constant byte address 0x0 - dummy sync flag']
  #allocation10 [shape = 'u32[]', space=smem, size = 0x4, offset = 0x44, fixed_abs, tag = 'smem constant byte address 0x44 - assertion arg 0']
  #allocation11 [shape = 'u32[]', space=smem, size = 0x4, offset = 0x48, fixed_abs, tag = 'smem constant byte address 0x48 - assertion arg 1']
  #allocation12 [shape = 's32[]', space=sflag, size = 0x4, offset = 0, fixed_abs, tag = 'sflag constant byte address 0x0 - dummy sync flag']
  #allocation13 [shape = 's32[]', space=sflag, size = 0x4, offset = 0, fixed_abs, tag = 'sflag constant byte address 0x0 - dummy sync flag']
  %s0 = inlined_call_operand.hbm [shape: f32[2,32,128], index: 0, kind: input, shape index: {}]
  %s1 = inlined_call_operand.hbm [shape: f32[6,256,128], index: 1, kind: input, shape index: {}]
  %s2 = inlined_call_operand.vmem [shape: f32[1,128], index: 2, kind: input, shape index: {}]
  %s3 = inlined_call_operand.hbm [shape: f32[2,16,128], index: 3, kind: output, shape index: {}]
  %s4 = sld [smem:[#allocation0]]
  $region61: #{tpu_custom_call.1} parent=0
    _
  %s6 = ssub.s32 1, %s4
  %s7 = scalar_select 0, %s6, %s4
  $region1: #{tpu_custom_call.1} parent=0
    #allocation4 [shape = 'u8[786432]{0}', space=vmem, size = 0xc0000, scoped, tag = 'input window, operand 1, single buffered']
    #allocation5 [shape = 's32[2]{0}', space=sflag, size = 0x8, scoped, tag = 'scoped memory for tpu_custom_call.1']
    #allocation6 [shape = 's32[2]{0}', space=sflag, size = 0x8, scoped, tag = 'scoped memory for tpu_custom_call.1']
    #allocation7 [shape = 'u8[16384]{0}', space=vmem, size = 0x4000, scoped, tag = 'output window, operand 0']
    %8 = vsyncpa [#allocation5], 0
    %9 = vsyncpa [#allocation6], 0
    %s10 = scalar_lea.sflag [#allocation6], 1
    %11 = vsyncpa %s10, 0
    loop: start=0, step=1, limit=4
    $region2: #{tpu_custom_call.1} parent=1 // loop_pre_header
      _
    $region3: #{tpu_custom_call.1} parent=1 // loop_header
      %s13 = sphi 0, %s17
      %p14 = scmp.ge.s32.totalorder %s13, 4
      %s20 = sphi 0, %s32
      %s21 = sphi 0, %s28
      %s22 = sphi 0, %s20
      %s23 = sphi 0, %s21
      %s24 = sphi 0, %s22
      %s25 = sphi 0, %s23
      %s33 = sphi 0, %s33
      %s35 = sphi 0, %s33
      %s36 = sphi 0, %s35
      %s50 = sphi 0, %s36
      %s54 = sphi 0, %s54
      %s56 = sphi 0, %s54
      %s57 = sphi 0, %s56
      %s71 = sphi 0, %s57
      %s79 = sphi 0, %s81
      %s82 = sphi 0, %s79
      %s83 = sphi 0, %s82
      %s99 = sphi 0, %s83
    $region4: #{tpu_custom_call.1} parent=1 // loop_header_branch
      %16 = sbr.rel (%p14) target = $region8
    $region5: #{tpu_custom_call.1} parent=1 // loop_body
      %s18 = ssub.s32 %s13, 1
      %s19 = ssub.s32 %s13, 2
      %s26 = sadd.s32 1, %s21
      %p27 = scmp.ge.s32.totalorder %s26, 1
      %s28 = scalar_select %p27, 0, %s26
      %s29 = sadd.s32 1, %s20
      %s30 = scalar_select %p27, %s29, %s20
      %p31 = scmp.ge.s32.totalorder %s30, 2
      %s32 = scalar_select %p31, 0, %s30
      %s34 = sadd.s32 %s33, 1
      %p37 = scmp.eq.s32.totalorder %s13, 1
      %p38 = scmp.ne.s32.totalorder %s33, %s35
      %p39 = scmp.eq.s32.totalorder %s13, 0
      %p40 = por %p38, %p39
      %p41 = scmp.ne.s32.totalorder %s33, %s35
      %p42 = scmp.eq.s32.totalorder %s18, 1
      %p43 = por %p41, %p42
      %p44 = scmp.ne.s32.totalorder %s35, %s36
      %p45 = scmp.eq.s32.totalorder %s18, 0
      %p46 = por %p44, %p45
      %p47 = scmp.ne.s32.totalorder %s35, %s36
      %p48 = scmp.eq.s32.totalorder %s19, 1
      %p49 = por %p47, %p48
      %p51 = scmp.ne.s32.totalorder %s36, %s50
      %p52 = scmp.eq.s32.totalorder %s19, 0
      %p53 = por %p51, %p52
      %s55 = sadd.s32 %s54, 1
      %p58 = scmp.eq.s32.totalorder %s13, 1
      %p59 = scmp.ne.s32.totalorder %s54, %s56
      %p60 = scmp.eq.s32.totalorder %s13, 0
      %p61 = por %p59, %p60
      %p62 = scmp.ne.s32.totalorder %s54, %s56
      %p63 = scmp.eq.s32.totalorder %s18, 1
      %p64 = por %p62, %p63
      %p65 = scmp.ne.s32.totalorder %s56, %s57
      %p66 = scmp.eq.s32.totalorder %s18, 0
      %p67 = por %p65, %p66
      %p68 = scmp.ne.s32.totalorder %s56, %s57
      %p69 = scmp.eq.s32.totalorder %s19, 1
      %p70 = por %p68, %p69
      %p72 = scmp.ne.s32.totalorder %s57, %s71
      %p73 = scmp.eq.s32.totalorder %s19, 0
      %p74 = por %p72, %p73
      %s75 = ssub.s32 %s20, %s32
      %s76 = ssub.s32 %s21, %s28
      %s77 = sor.u32 %s75, %s76
      %p78 = scmp.eq.s32.totalorder %s77, 0
      %s80 = sadd.s32 %s79, 1
      %s81 = scalar_select %p78, %s79, %s80
      %p84 = pneg %p78
      %p85 = scmp.eq.s32.totalorder %s13, 1
      %p86 = por %p84, %p85
      %p87 = scmp.ne.s32.totalorder %s79, %s82
      %p88 = scmp.eq.s32.totalorder %s13, 0
      %p89 = por %p87, %p88
      %p90 = scmp.ne.s32.totalorder %s79, %s82
      %p91 = scmp.eq.s32.totalorder %s18, 1
      %p92 = por %p90, %p91
      %p93 = scmp.ne.s32.totalorder %s82, %s83
      %p94 = scmp.eq.s32.totalorder %s18, 0
      %p95 = por %p93, %p94
      %p96 = scmp.ne.s32.totalorder %s82, %s83
      %p97 = scmp.eq.s32.totalorder %s19, 1
      %p98 = por %p96, %p97
      %p100 = scmp.ne.s32.totalorder %s83, %s99
      %p101 = scmp.eq.s32.totalorder %s19, 0
      %p102 = por %p100, %p101
      %p103 = scmp.le.s32.totalorder 1, %s13
      %p104 = scmp.lt.s32.totalorder %s13, 3
      %p105 = pnand %p103, %p104
      %p106 = pneg %p105
      // Predicated region
      $region9: #{tpu_custom_call.1} parent=5 // pred_check
        _
      $region10: #{tpu_custom_call.1} parent=5 // pred_check_branch
        %108 = sbr.rel (%p105) target = $region12
      $region11: #{tpu_custom_call.1} parent=5 // pred_region
        %s109 = ssub.s32 %s13, 1
        // Predicated region
        $region13: #{tpu_custom_call.1} parent=11 // pred_check
          %p110 = pneg %p46
        $region14: #{tpu_custom_call.1} parent=11 // pred_check_branch
          %112 = sbr.rel (%p110) target = $region16
        $region15: #{tpu_custom_call.1} parent=11 // pred_region
          %114 = vsyncadd [#allocation5], 0
          %s115 = sshll.u32 %s1, 4
          %s116 = int_to_ptr.hbm [resolvable:$true] %s115
          %s117 = sshll.u32 [#allocation4], 4
          %s118 = int_to_ptr.vmem [resolvable:$true] %s117
          %123 = dma.hbm_to_vmem [thread:$0]  %s116, 24576, %s118, [#allocation5], 128, 128, 8
        $region16: #{tpu_custom_call.1} parent=11 // pred_fallthru
          _
        // Predicated region
        $region17: #{tpu_custom_call.1} parent=11 // pred_check
          %p124 = pneg %p67
        $region18: #{tpu_custom_call.1} parent=11 // pred_check_branch
          %126 = sbr.rel (%p124) target = $region20
        $region19: #{tpu_custom_call.1} parent=11 // pred_region
          _
        $region20: #{tpu_custom_call.1} parent=11 // pred_fallthru
          _
      $region12: #{tpu_custom_call.1} parent=5 // pred_fallthru
        _
      %p127 = scmp.lt.s32.totalorder %s13, 2
      // Predicated region
      $region21: #{tpu_custom_call.1} parent=5 // pred_check
        %p128 = pneg %p127
      $region22: #{tpu_custom_call.1} parent=5 // pred_check_branch
        %130 = sbr.rel (%p128) target = $region24
      $region23: #{tpu_custom_call.1} parent=5 // pred_region
        _
      $region24: #{tpu_custom_call.1} parent=5 // pred_fallthru
        _
      %p131 = scmp.le.s32.totalorder 1, %s13
      %p132 = scmp.lt.s32.totalorder %s13, 3
      %p133 = pnand %p131, %p132
      %p134 = pneg %p133
      // Predicated region
      $region25: #{tpu_custom_call.1} parent=5 // pred_check
        _
      $region26: #{tpu_custom_call.1} parent=5 // pred_check_branch
        %136 = sbr.rel (%p133) target = $region28
      $region27: #{tpu_custom_call.1} parent=5 // pred_region
        %s137 = ssub.s32 %s13, 1
        // Predicated region
        $region29: #{tpu_custom_call.1} parent=27 // pred_check
          %p138 = pneg %p46
        $region30: #{tpu_custom_call.1} parent=27 // pred_check_branch
          %140 = sbr.rel (%p138) target = $region32
        $region31: #{tpu_custom_call.1} parent=27 // pred_region
          %142 = dma.done [#allocation5], 24576
        $region32: #{tpu_custom_call.1} parent=27 // pred_fallthru
          _
        %p143 = pneg %p46
        %p144 = pneg %p43
        %p145 = pneg %p67
        %p146 = pneg %p64
        %p147 = pneg %p95
        %p148 = pneg %p92
        %s149 = sand.u32 %s82, 1
        %s150 = scalar_lea.sflag [#allocation6], %s149
        %s151 = sand.u32 %s82, 1
        %s152 = smul.addr %s151, 16
        %s153 = scalar_lea.vmem [#allocation7], %s152
        %s154 = smul.u32 2, %s23
        %p155 = scmp.lt.s32.totalorder %s23, 0
        %s156 = ssub.s32 0, %s23
        %s157 = scalar_select %p155, %s156, %s23
        %s158 = sand.u32 %s157, 1
        %s159 = ssub.s32 0, %s158
        %s160 = scalar_select %p155, %s159, %s158
        %p161 = scmp.eq.s32.totalorder %s23, 0
        // Predicated region
        $region33: #{tpu_custom_call.1} parent=27 // pred_check
          %p162 = pneg %p161
        $region34: #{tpu_custom_call.1} parent=27 // pred_check_branch
          %164 = sbr.rel (%p162) target = $region36
        $region35: #{tpu_custom_call.1} parent=27 // pred_region
          %s165 = smul.u32 %s23, 16
          %s166 = smul.u32 %s22, 32
          %s167 = sadd.s32 %s165, %s166
          %s168 = scalar_lea.hbm %s0, %s167
          %s169 = smul.u32 %s160, 32
          %s170 = scalar_lea.vmem [#allocation2], %s169
          %s171 = scalar_lea.sflag [#allocation3], %s160
          // Predicated region
          $region37: #{tpu_custom_call.1} parent=35 // pred_check
            _
          $region38: #{tpu_custom_call.1} parent=35 // pred_check_branch
            %173 = sbr.rel target = $region40
          $region39: #{tpu_custom_call.1} parent=35 // pred_region
            %174 = sst [smem:[#allocation10]] [#allocation9]
            %175 = sst [smem:[#allocation11]] [#allocation8]
          $region40: #{tpu_custom_call.1} parent=35 // pred_fallthru
            _
          %177 = shalt.err (0)
          %s179 = sshll.u32 %s168, 4
          %s180 = int_to_ptr.hbm [resolvable:$true] %s179
          %s181 = sshll.u32 %s170, 4
          %s182 = int_to_ptr.vmem [resolvable:$true] %s181
          %184 = dma.hbm_to_vmem [thread:$0]  %s180, 512, %s182, %s171
        $region36: #{tpu_custom_call.1} parent=27 // pred_fallthru
          _
        %s185 = smul.u32 %s23, 16
        %s186 = smul.u32 %s160, 32
        %s187 = scalar_lea.vmem [#allocation2], %s186
        %s188 = scalar_lea.sflag [#allocation3], %s160
        %s189 = smul.u32 32, 1
        %s190 = sshll.u32 %s189, 4
        %191 = dma.done %s188, %s190
        %s192 = sadd.s32 %s23, 1
        %p193 = scmp.lt.s32.totalorder %s192, 1
        // Predicated region
        $region41: #{tpu_custom_call.1} parent=27 // pred_check
          %p194 = pneg %p193
        $region42: #{tpu_custom_call.1} parent=27 // pred_check_branch
          %196 = sbr.rel (%p194) target = $region44
        $region43: #{tpu_custom_call.1} parent=27 // pred_region
          %s197 = ssub.s32 1, %s160
          %s198 = smul.u32 %s192, 16
          %s199 = smul.u32 %s22, 32
          %s200 = sadd.s32 %s198, %s199
          %s201 = scalar_lea.hbm %s0, %s200
          %s202 = smul.u32 %s197, 32
          %s203 = scalar_lea.vmem [#allocation2], %s202
          %s204 = scalar_lea.sflag [#allocation3], %s197
          // Predicated region
          $region45: #{tpu_custom_call.1} parent=43 // pred_check
            _
          $region46: #{tpu_custom_call.1} parent=43 // pred_check_branch
            %206 = sbr.rel target = $region48
          $region47: #{tpu_custom_call.1} parent=43 // pred_region
            %207 = sst [smem:[#allocation10]] [#allocation13]
            %208 = sst [smem:[#allocation11]] [#allocation12]
          $region48: #{tpu_custom_call.1} parent=43 // pred_fallthru
            _
          %210 = shalt.err (0)
          %s212 = sshll.u32 %s201, 4
          %s213 = int_to_ptr.hbm [resolvable:$true] %s212
          %s214 = sshll.u32 %s203, 4
          %s215 = int_to_ptr.vmem [resolvable:$true] %s214
          %217 = dma.hbm_to_vmem [thread:$0]  %s213, 512, %s215, %s204
        $region44: #{tpu_custom_call.1} parent=27 // pred_fallthru
          _
        %v218 = vld [vmem:[%s187] sm:$0xff]
        %v219 = vld [vmem:[%s187 + $0x8] sm:$0xff]
        %v220 = vld [vmem:[%s187 + $0x10] sm:$0xff]
        %v221 = vld [vmem:[%s187 + $0x18] sm:$0xff]
        %v222 = vld [vmem:[%s2] sm:$0x1]
        %vm226 = vcmask 1046528
        %v227 = vrot.slane %v218, 1
        %v228 = vrot.slane %v219, 1
        %v229 = vsel %vm226, %v227, %v228
        %v230 = vrot.slane %v220, 1
        %v231 = vsel %vm226, %v228, %v230
        %v234 = vld [vmem:[#allocation4] sm:$0xff]
        %v235 = vld [vmem:[#allocation4 + $0x8] sm:$0xff]
        %v236 = vld [vmem:[#allocation4 + $0x10] sm:$0xff]
        %v237 = vld [vmem:[#allocation4 + $0x18] sm:$0xff]
        %v238 = vld [vmem:[#allocation4 + $0x20] sm:$0xff]
        %v239 = vld [vmem:[#allocation4 + $0x28] sm:$0xff]
        %v240 = vld [vmem:[#allocation4 + $0x30] sm:$0xff]
        %v241 = vld [vmem:[#allocation4 + $0x38] sm:$0xff]
        %v242 = vld [vmem:[#allocation4 + $0x40] sm:$0xff]
        %v243 = vld [vmem:[#allocation4 + $0x48] sm:$0xff]
        %v244 = vld [vmem:[#allocation4 + $0x50] sm:$0xff]
        %v245 = vld [vmem:[#allocation4 + $0x58] sm:$0xff]
        %v246 = vld [vmem:[#allocation4 + $0x60] sm:$0xff]
        %v247 = vld [vmem:[#allocation4 + $0x68] sm:$0xff]
        %v248 = vld [vmem:[#allocation4 + $0x70] sm:$0xff]
        %v249 = vld [vmem:[#allocation4 + $0x78] sm:$0xff]
        %v250 = vld [vmem:[#allocation4 + $0x80] sm:$0xff]
        %v251 = vld [vmem:[#allocation4 + $0x88] sm:$0xff]
        %v252 = vld [vmem:[#allocation4 + $0x90] sm:$0xff]
        %v253 = vld [vmem:[#allocation4 + $0x98] sm:$0xff]
        %v254 = vld [vmem:[#allocation4 + $0xa0] sm:$0xff]
        %v255 = vld [vmem:[#allocation4 + $0xa8] sm:$0xff]
        %v256 = vld [vmem:[#allocation4 + $0xb0] sm:$0xff]
        %v257 = vld [vmem:[#allocation4 + $0xb8] sm:$0xff]
        %v258 = vld [vmem:[#allocation4 + $0xc0] sm:$0xff]
        %v259 = vld [vmem:[#allocation4 + $0xc8] sm:$0xff]
        %v260 = vld [vmem:[#allocation4 + $0xd0] sm:$0xff]
        %v261 = vld [vmem:[#allocation4 + $0xd8] sm:$0xff]
        %v262 = vld [vmem:[#allocation4 + $0xe0] sm:$0xff]
        %v263 = vld [vmem:[#allocation4 + $0xe8] sm:$0xff]
        %v264 = vld [vmem:[#allocation4 + $0xf0] sm:$0xff]
        %v265 = vld [vmem:[#allocation4 + $0xf8] sm:$0xff]
        %266 = vmatpush.msra.mxu0 %v249
        %267 = vmatpush.msra.mxu0 %v248
        %268 = vmatpush.msra.mxu0 %v247
        %269 = vmatpush.msra.mxu0 %v246
        %270 = vmatpush.msra.mxu0 %v245
        %271 = vmatpush.msra.mxu0 %v244
        %272 = vmatpush.msra.mxu0 %v243
        %273 = vmatpush.msra.mxu0 %v242
        %274 = vmatpush.msra.mxu0 %v241
        %275 = vmatpush.msra.mxu0 %v240
        %276 = vmatpush.msra.mxu0 %v239
        %277 = vmatpush.msra.mxu0 %v238
        %278 = vmatpush.msra.mxu0 %v237
        %279 = vmatpush.msra.mxu0 %v236
        %280 = vmatpush.msra.mxu0 %v235
        %281 = vmatpush.msra.mxu0 %v234
        %282 = vmatmul.f32.gmra.mxu0 %v218
        %v283 = vpop.f32.mrf.mxu0
        %v284 = vadd.f32 0.0, %v283
        %285 = vmatmul.f32.gmra.mxu0 %v219
        %v286 = vpop.f32.mrf.mxu0
        %v287 = vadd.f32 0.0, %v286
        %288 = vdwg.mxu0
        %289 = vmatpush.msra.mxu0 %v265
        %290 = vmatpush.msra.mxu0 %v264
        %291 = vmatpush.msra.mxu0 %v263
        %292 = vmatpush.msra.mxu0 %v262
        %293 = vmatpush.msra.mxu0 %v261
        %294 = vmatpush.msra.mxu0 %v260
        %295 = vmatpush.msra.mxu0 %v259
        %296 = vmatpush.msra.mxu0 %v258
        %297 = vmatpush.msra.mxu0 %v257
        %298 = vmatpush.msra.mxu0 %v256
        %299 = vmatpush.msra.mxu0 %v255
        %300 = vmatpush.msra.mxu0 %v254
        %301 = vmatpush.msra.mxu0 %v253
        %302 = vmatpush.msra.mxu0 %v252
        %303 = vmatpush.msra.mxu0 %v251
        %304 = vmatpush.msra.mxu0 %v250
        %305 = vmatmul.f32.gmra.mxu0 %v229
        %v306 = vpop.f32.mrf.mxu0
        %v307 = vadd.f32 %v284, %v306
        %308 = vmatmul.f32.gmra.mxu0 %v231
        %v309 = vpop.f32.mrf.mxu0
        %v310 = vadd.f32 %v287, %v309
        %311 = vdwg.mxu0
        %v313 = vperm.slane %v222, 0
        %v315 = vadd.f32 %v313, %v307
        %v316 = vadd.f32 %v313, %v310
        %317 = vst [vmem:[%s153] sm:$0xff] %v315
        %318 = vst [vmem:[%s153 + $0x8] sm:$0xff] %v316
        %v319 = vld [vmem:[%s153] sm:$0xff]
        %v320 = vld [vmem:[%s153 + $0x8] sm:$0xff]
        %s321 = scalar_lea.vmem [#allocation4], 256
        %v322 = vld [vmem:[%s321] sm:$0xff]
        %v323 = vld [vmem:[%s321 + $0x8] sm:$0xff]
        %v324 = vld [vmem:[%s321 + $0x10] sm:$0xff]
        %v325 = vld [vmem:[%s321 + $0x18] sm:$0xff]
        %v326 = vld [vmem:[%s321 + $0x20] sm:$0xff]
        %v327 = vld [vmem:[%s321 + $0x28] sm:$0xff]
        %v328 = vld [vmem:[%s321 + $0x30] sm:$0xff]
        %v329 = vld [vmem:[%s321 + $0x38] sm:$0xff]
        %v330 = vld [vmem:[%s321 + $0x40] sm:$0xff]
        %v331 = vld [vmem:[%s321 + $0x48] sm:$0xff]
        %v332 = vld [vmem:[%s321 + $0x50] sm:$0xff]
        %v333 = vld [vmem:[%s321 + $0x58] sm:$0xff]
        %v334 = vld [vmem:[%s321 + $0x60] sm:$0xff]
        %v335 = vld [vmem:[%s321 + $0x68] sm:$0xff]
        %v336 = vld [vmem:[%s321 + $0x70] sm:$0xff]
        %v337 = vld [vmem:[%s321 + $0x78] sm:$0xff]
        %v338 = vld [vmem:[%s321 + $0x80] sm:$0xff]
        %v339 = vld [vmem:[%s321 + $0x88] sm:$0xff]
        %v340 = vld [vmem:[%s321 + $0x90] sm:$0xff]
        %v341 = vld [vmem:[%s321 + $0x98] sm:$0xff]
        %v342 = vld [vmem:[%s321 + $0xa0] sm:$0xff]
        %v343 = vld [vmem:[%s321 + $0xa8] sm:$0xff]
        %v344 = vld [vmem:[%s321 + $0xb0] sm:$0xff]
        %v345 = vld [vmem:[%s321 + $0xb8] sm:$0xff]
        %v346 = vld [vmem:[%s321 + $0xc0] sm:$0xff]
        %v347 = vld [vmem:[%s321 + $0xc8] sm:$0xff]
        %v348 = vld [vmem:[%s321 + $0xd0] sm:$0xff]
        %v349 = vld [vmem:[%s321 + $0xd8] sm:$0xff]
        %v350 = vld [vmem:[%s321 + $0xe0] sm:$0xff]
        %v351 = vld [vmem:[%s321 + $0xe8] sm:$0xff]
        %v352 = vld [vmem:[%s321 + $0xf0] sm:$0xff]
        %v353 = vld [vmem:[%s321 + $0xf8] sm:$0xff]
        %vm354 = vcmask 1045504
        %v355 = vrot.slane %v218, 2
        %v356 = vrot.slane %v219, 2
        %v357 = vsel %vm354, %v355, %v356
        %v358 = vrot.slane %v229, 2
        %v359 = vrot.slane %v231, 2
        %v360 = vsel %vm354, %v358, %v359
        %v361 = vrot.slane %v220, 2
        %v362 = vsel %vm354, %v356, %v361
        %v363 = vrot.slane %v230, 2
        %v364 = vsel %vm354, %v359, %v363
        %369 = vmatpush.msra.mxu0 %v337
        %370 = vmatpush.msra.mxu0 %v336
        %371 = vmatpush.msra.mxu0 %v335
        %372 = vmatpush.msra.mxu0 %v334
        %373 = vmatpush.msra.mxu0 %v333
        %374 = vmatpush.msra.mxu0 %v332
        %375 = vmatpush.msra.mxu0 %v331
        %376 = vmatpush.msra.mxu0 %v330
        %377 = vmatpush.msra.mxu0 %v329
        %378 = vmatpush.msra.mxu0 %v328
        %379 = vmatpush.msra.mxu0 %v327
        %380 = vmatpush.msra.mxu0 %v326
        %381 = vmatpush.msra.mxu0 %v325
        %382 = vmatpush.msra.mxu0 %v324
        %383 = vmatpush.msra.mxu0 %v323
        %384 = vmatpush.msra.mxu0 %v322
        %385 = vmatmul.f32.gmra.mxu0 %v357
        %v386 = vpop.f32.mrf.mxu0
        %v387 = vadd.f32 0.0, %v386
        %388 = vmatmul.f32.gmra.mxu0 %v362
        %v389 = vpop.f32.mrf.mxu0
        %v390 = vadd.f32 0.0, %v389
        %391 = vdwg.mxu0
        %392 = vmatpush.msra.mxu0 %v353
        %393 = vmatpush.msra.mxu0 %v352
        %394 = vmatpush.msra.mxu0 %v351
        %395 = vmatpush.msra.mxu0 %v350
        %396 = vmatpush.msra.mxu0 %v349
        %397 = vmatpush.msra.mxu0 %v348
        %398 = vmatpush.msra.mxu0 %v347
        %399 = vmatpush.msra.mxu0 %v346
        %400 = vmatpush.msra.mxu0 %v345
        %401 = vmatpush.msra.mxu0 %v344
        %402 = vmatpush.msra.mxu0 %v343
        %403 = vmatpush.msra.mxu0 %v342
        %404 = vmatpush.msra.mxu0 %v341
        %405 = vmatpush.msra.mxu0 %v340
        %406 = vmatpush.msra.mxu0 %v339
        %407 = vmatpush.msra.mxu0 %v338
        %408 = vmatmul.f32.gmra.mxu0 %v360
        %v409 = vpop.f32.mrf.mxu0
        %v410 = vadd.f32 %v387, %v409
        %411 = vmatmul.f32.gmra.mxu0 %v364
        %v412 = vpop.f32.mrf.mxu0
        %v413 = vadd.f32 %v390, %v412
        %414 = vdwg.mxu0
        %v415 = vadd.f32 %v319, %v410
        %v416 = vadd.f32 %v320, %v413
        %417 = vst [vmem:[%s153] sm:$0xff] %v415
        %418 = vst [vmem:[%s153 + $0x8] sm:$0xff] %v416
        %v419 = vld [vmem:[%s153] sm:$0xff]
        %v420 = vld [vmem:[%s153 + $0x8] sm:$0xff]
        %s421 = scalar_lea.vmem [#allocation4], 512
        %v422 = vld [vmem:[%s421] sm:$0xff]
        %v423 = vld [vmem:[%s421 + $0x8] sm:$0xff]
        %v424 = vld [vmem:[%s421 + $0x10] sm:$0xff]
        %v425 = vld [vmem:[%s421 + $0x18] sm:$0xff]
        %v426 = vld [vmem:[%s421 + $0x20] sm:$0xff]
        %v427 = vld [vmem:[%s421 + $0x28] sm:$0xff]
        %v428 = vld [vmem:[%s421 + $0x30] sm:$0xff]
        %v429 = vld [vmem:[%s421 + $0x38] sm:$0xff]
        %v430 = vld [vmem:[%s421 + $0x40] sm:$0xff]
        %v431 = vld [vmem:[%s421 + $0x48] sm:$0xff]
        %v432 = vld [vmem:[%s421 + $0x50] sm:$0xff]
        %v433 = vld [vmem:[%s421 + $0x58] sm:$0xff]
        %v434 = vld [vmem:[%s421 + $0x60] sm:$0xff]
        %v435 = vld [vmem:[%s421 + $0x68] sm:$0xff]
        %v436 = vld [vmem:[%s421 + $0x70] sm:$0xff]
        %v437 = vld [vmem:[%s421 + $0x78] sm:$0xff]
        %v438 = vld [vmem:[%s421 + $0x80] sm:$0xff]
        %v439 = vld [vmem:[%s421 + $0x88] sm:$0xff]
        %v440 = vld [vmem:[%s421 + $0x90] sm:$0xff]
        %v441 = vld [vmem:[%s421 + $0x98] sm:$0xff]
        %v442 = vld [vmem:[%s421 + $0xa0] sm:$0xff]
        %v443 = vld [vmem:[%s421 + $0xa8] sm:$0xff]
        %v444 = vld [vmem:[%s421 + $0xb0] sm:$0xff]
        %v445 = vld [vmem:[%s421 + $0xb8] sm:$0xff]
        %v446 = vld [vmem:[%s421 + $0xc0] sm:$0xff]
        %v447 = vld [vmem:[%s421 + $0xc8] sm:$0xff]
        %v448 = vld [vmem:[%s421 + $0xd0] sm:$0xff]
        %v449 = vld [vmem:[%s421 + $0xd8] sm:$0xff]
        %v450 = vld [vmem:[%s421 + $0xe0] sm:$0xff]
        %v451 = vld [vmem:[%s421 + $0xe8] sm:$0xff]
        %v452 = vld [vmem:[%s421 + $0xf0] sm:$0xff]
        %v453 = vld [vmem:[%s421 + $0xf8] sm:$0xff]
        %vm454 = vcmask 1043456
        %v455 = vrot.slane %v218, 4
        %v456 = vrot.slane %v219, 4
        %v457 = vsel %vm454, %v455, %v456
        %v458 = vrot.slane %v229, 4
        %v459 = vrot.slane %v231, 4
        %v460 = vsel %vm454, %v458, %v459
        %v461 = vrot.slane %v220, 4
        %v462 = vsel %vm454, %v456, %v461
        %v463 = vrot.slane %v230, 4
        %v464 = vsel %vm454, %v459, %v463
        %469 = vmatpush.msra.mxu0 %v437
        %470 = vmatpush.msra.mxu0 %v436
        %471 = vmatpush.msra.mxu0 %v435
        %472 = vmatpush.msra.mxu0 %v434
        %473 = vmatpush.msra.mxu0 %v433
        %474 = vmatpush.msra.mxu0 %v432
        %475 = vmatpush.msra.mxu0 %v431
        %476 = vmatpush.msra.mxu0 %v430
        %477 = vmatpush.msra.mxu0 %v429
        %478 = vmatpush.msra.mxu0 %v428
        %479 = vmatpush.msra.mxu0 %v427
        %480 = vmatpush.msra.mxu0 %v426
        %481 = vmatpush.msra.mxu0 %v425
        %482 = vmatpush.msra.mxu0 %v424
        %483 = vmatpush.msra.mxu0 %v423
        %484 = vmatpush.msra.mxu0 %v422
        %485 = vmatmul.f32.gmra.mxu0 %v457
        %v486 = vpop.f32.mrf.mxu0
        %v487 = vadd.f32 0.0, %v486
        %488 = vmatmul.f32.gmra.mxu0 %v462
        %v489 = vpop.f32.mrf.mxu0
        %v490 = vadd.f32 0.0, %v489
        %491 = vdwg.mxu0
        %492 = vmatpush.msra.mxu0 %v453
        %493 = vmatpush.msra.mxu0 %v452
        %494 = vmatpush.msra.mxu0 %v451
        %495 = vmatpush.msra.mxu0 %v450
        %496 = vmatpush.msra.mxu0 %v449
        %497 = vmatpush.msra.mxu0 %v448
        %498 = vmatpush.msra.mxu0 %v447
        %499 = vmatpush.msra.mxu0 %v446
        %500 = vmatpush.msra.mxu0 %v445
        %501 = vmatpush.msra.mxu0 %v444
        %502 = vmatpush.msra.mxu0 %v443
        %503 = vmatpush.msra.mxu0 %v442
        %504 = vmatpush.msra.mxu0 %v441
        %505 = vmatpush.msra.mxu0 %v440
        %506 = vmatpush.msra.mxu0 %v439
        %507 = vmatpush.msra.mxu0 %v438
        %508 = vmatmul.f32.gmra.mxu0 %v460
        %v509 = vpop.f32.mrf.mxu0
        %v510 = vadd.f32 %v487, %v509
        %511 = vmatmul.f32.gmra.mxu0 %v464
        %v512 = vpop.f32.mrf.mxu0
        %v513 = vadd.f32 %v490, %v512
        %514 = vdwg.mxu0
        %v515 = vadd.f32 %v419, %v510
        %v516 = vadd.f32 %v420, %v513
        %517 = vst [vmem:[%s153] sm:$0xff] %v515
        %518 = vst [vmem:[%s153 + $0x8] sm:$0xff] %v516
        %v519 = vld [vmem:[%s153] sm:$0xff]
        %v520 = vld [vmem:[%s153 + $0x8] sm:$0xff]
        %s521 = scalar_lea.vmem [#allocation4], 768
        %v522 = vld [vmem:[%s521] sm:$0xff]
        %v523 = vld [vmem:[%s521 + $0x8] sm:$0xff]
        %v524 = vld [vmem:[%s521 + $0x10] sm:$0xff]
        %v525 = vld [vmem:[%s521 + $0x18] sm:$0xff]
        %v526 = vld [vmem:[%s521 + $0x20] sm:$0xff]
        %v527 = vld [vmem:[%s521 + $0x28] sm:$0xff]
        %v528 = vld [vmem:[%s521 + $0x30] sm:$0xff]
        %v529 = vld [vmem:[%s521 + $0x38] sm:$0xff]
        %v530 = vld [vmem:[%s521 + $0x40] sm:$0xff]
        %v531 = vld [vmem:[%s521 + $0x48] sm:$0xff]
        %v532 = vld [vmem:[%s521 + $0x50] sm:$0xff]
        %v533 = vld [vmem:[%s521 + $0x58] sm:$0xff]
        %v534 = vld [vmem:[%s521 + $0x60] sm:$0xff]
        %v535 = vld [vmem:[%s521 + $0x68] sm:$0xff]
        %v536 = vld [vmem:[%s521 + $0x70] sm:$0xff]
        %v537 = vld [vmem:[%s521 + $0x78] sm:$0xff]
        %v538 = vld [vmem:[%s521 + $0x80] sm:$0xff]
        %v539 = vld [vmem:[%s521 + $0x88] sm:$0xff]
        %v540 = vld [vmem:[%s521 + $0x90] sm:$0xff]
        %v541 = vld [vmem:[%s521 + $0x98] sm:$0xff]
        %v542 = vld [vmem:[%s521 + $0xa0] sm:$0xff]
        %v543 = vld [vmem:[%s521 + $0xa8] sm:$0xff]
        %v544 = vld [vmem:[%s521 + $0xb0] sm:$0xff]
        %v545 = vld [vmem:[%s521 + $0xb8] sm:$0xff]
        %v546 = vld [vmem:[%s521 + $0xc0] sm:$0xff]
        %v547 = vld [vmem:[%s521 + $0xc8] sm:$0xff]
        %v548 = vld [vmem:[%s521 + $0xd0] sm:$0xff]
        %v549 = vld [vmem:[%s521 + $0xd8] sm:$0xff]
        %v550 = vld [vmem:[%s521 + $0xe0] sm:$0xff]
        %v551 = vld [vmem:[%s521 + $0xe8] sm:$0xff]
        %v552 = vld [vmem:[%s521 + $0xf0] sm:$0xff]
        %v553 = vld [vmem:[%s521 + $0xf8] sm:$0xff]
        %vm554 = vcmask 1041408
        %v555 = vrot.slane %v218, 6
        %v556 = vrot.slane %v219, 6
        %v557 = vsel %vm554, %v555, %v556
        %v558 = vrot.slane %v229, 6
        %v559 = vrot.slane %v231, 6
        %v560 = vsel %vm554, %v558, %v559
        %v561 = vrot.slane %v220, 6
        %v562 = vsel %vm554, %v556, %v561
        %v563 = vrot.slane %v230, 6
        %v564 = vsel %vm554, %v559, %v563
        %569 = vmatpush.msra.mxu0 %v537
        %570 = vmatpush.msra.mxu0 %v536
        %571 = vmatpush.msra.mxu0 %v535
        %572 = vmatpush.msra.mxu0 %v534
        %573 = vmatpush.msra.mxu0 %v533
        %574 = vmatpush.msra.mxu0 %v532
        %575 = vmatpush.msra.mxu0 %v531
        %576 = vmatpush.msra.mxu0 %v530
        %577 = vmatpush.msra.mxu0 %v529
        %578 = vmatpush.msra.mxu0 %v528
        %579 = vmatpush.msra.mxu0 %v527
        %580 = vmatpush.msra.mxu0 %v526
        %581 = vmatpush.msra.mxu0 %v525
        %582 = vmatpush.msra.mxu0 %v524
        %583 = vmatpush.msra.mxu0 %v523
        %584 = vmatpush.msra.mxu0 %v522
        %585 = vmatmul.f32.gmra.mxu0 %v557
        %v586 = vpop.f32.mrf.mxu0
        %v587 = vadd.f32 0.0, %v586
        %588 = vmatmul.f32.gmra.mxu0 %v562
        %v589 = vpop.f32.mrf.mxu0
        %v590 = vadd.f32 0.0, %v589
        %591 = vdwg.mxu0
        %592 = vmatpush.msra.mxu0 %v553
        %593 = vmatpush.msra.mxu0 %v552
        %594 = vmatpush.msra.mxu0 %v551
        %595 = vmatpush.msra.mxu0 %v550
        %596 = vmatpush.msra.mxu0 %v549
        %597 = vmatpush.msra.mxu0 %v548
        %598 = vmatpush.msra.mxu0 %v547
        %599 = vmatpush.msra.mxu0 %v546
        %600 = vmatpush.msra.mxu0 %v545
        %601 = vmatpush.msra.mxu0 %v544
        %602 = vmatpush.msra.mxu0 %v543
        %603 = vmatpush.msra.mxu0 %v542
        %604 = vmatpush.msra.mxu0 %v541
        %605 = vmatpush.msra.mxu0 %v540
        %606 = vmatpush.msra.mxu0 %v539
        %607 = vmatpush.msra.mxu0 %v538
        %608 = vmatmul.f32.gmra.mxu0 %v560
        %v609 = vpop.f32.mrf.mxu0
        %v610 = vadd.f32 %v587, %v609
        %611 = vmatmul.f32.gmra.mxu0 %v564
        %v612 = vpop.f32.mrf.mxu0
        %v613 = vadd.f32 %v590, %v612
        %614 = vdwg.mxu0
        %v615 = vadd.f32 %v519, %v610
        %v616 = vadd.f32 %v520, %v613
        %617 = vst [vmem:[%s153] sm:$0xff] %v615
        %618 = vst [vmem:[%s153 + $0x8] sm:$0xff] %v616
        %v619 = vld [vmem:[%s153] sm:$0xff]
        %v620 = vld [vmem:[%s153 + $0x8] sm:$0xff]
        %v622 = vrot.slane %v221, 1
        %v623 = vsel %vm226, %v230, %v622
        %s625 = scalar_lea.vmem [#allocation4], 1024
        %v626 = vld [vmem:[%s625] sm:$0xff]
        %v627 = vld [vmem:[%s625 + $0x8] sm:$0xff]
        %v628 = vld [vmem:[%s625 + $0x10] sm:$0xff]
        %v629 = vld [vmem:[%s625 + $0x18] sm:$0xff]
        %v630 = vld [vmem:[%s625 + $0x20] sm:$0xff]
        %v631 = vld [vmem:[%s625 + $0x28] sm:$0xff]
        %v632 = vld [vmem:[%s625 + $0x30] sm:$0xff]
        %v633 = vld [vmem:[%s625 + $0x38] sm:$0xff]
        %v634 = vld [vmem:[%s625 + $0x40] sm:$0xff]
        %v635 = vld [vmem:[%s625 + $0x48] sm:$0xff]
        %v636 = vld [vmem:[%s625 + $0x50] sm:$0xff]
        %v637 = vld [vmem:[%s625 + $0x58] sm:$0xff]
        %v638 = vld [vmem:[%s625 + $0x60] sm:$0xff]
        %v639 = vld [vmem:[%s625 + $0x68] sm:$0xff]
        %v640 = vld [vmem:[%s625 + $0x70] sm:$0xff]
        %v641 = vld [vmem:[%s625 + $0x78] sm:$0xff]
        %v642 = vld [vmem:[%s625 + $0x80] sm:$0xff]
        %v643 = vld [vmem:[%s625 + $0x88] sm:$0xff]
        %v644 = vld [vmem:[%s625 + $0x90] sm:$0xff]
        %v645 = vld [vmem:[%s625 + $0x98] sm:$0xff]
        %v646 = vld [vmem:[%s625 + $0xa0] sm:$0xff]
        %v647 = vld [vmem:[%s625 + $0xa8] sm:$0xff]
        %v648 = vld [vmem:[%s625 + $0xb0] sm:$0xff]
        %v649 = vld [vmem:[%s625 + $0xb8] sm:$0xff]
        %v650 = vld [vmem:[%s625 + $0xc0] sm:$0xff]
        %v651 = vld [vmem:[%s625 + $0xc8] sm:$0xff]
        %v652 = vld [vmem:[%s625 + $0xd0] sm:$0xff]
        %v653 = vld [vmem:[%s625 + $0xd8] sm:$0xff]
        %v654 = vld [vmem:[%s625 + $0xe0] sm:$0xff]
        %v655 = vld [vmem:[%s625 + $0xe8] sm:$0xff]
        %v656 = vld [vmem:[%s625 + $0xf0] sm:$0xff]
        %v657 = vld [vmem:[%s625 + $0xf8] sm:$0xff]
        %658 = vmatpush.msra.mxu0 %v641
        %659 = vmatpush.msra.mxu0 %v640
        %660 = vmatpush.msra.mxu0 %v639
        %661 = vmatpush.msra.mxu0 %v638
        %662 = vmatpush.msra.mxu0 %v637
        %663 = vmatpush.msra.mxu0 %v636
        %664 = vmatpush.msra.mxu0 %v635
        %665 = vmatpush.msra.mxu0 %v634
        %666 = vmatpush.msra.mxu0 %v633
        %667 = vmatpush.msra.mxu0 %v632
        %668 = vmatpush.msra.mxu0 %v631
        %669 = vmatpush.msra.mxu0 %v630
        %670 = vmatpush.msra.mxu0 %v629
        %671 = vmatpush.msra.mxu0 %v628
        %672 = vmatpush.msra.mxu0 %v627
        %673 = vmatpush.msra.mxu0 %v626
        %674 = vmatmul.f32.gmra.mxu0 %v219
        %v675 = vpop.f32.mrf.mxu0
        %v676 = vadd.f32 0.0, %v675
        %677 = vmatmul.f32.gmra.mxu0 %v220
        %v678 = vpop.f32.mrf.mxu0
        %v679 = vadd.f32 0.0, %v678
        %680 = vdwg.mxu0
        %681 = vmatpush.msra.mxu0 %v657
        %682 = vmatpush.msra.mxu0 %v656
        %683 = vmatpush.msra.mxu0 %v655
        %684 = vmatpush.msra.mxu0 %v654
        %685 = vmatpush.msra.mxu0 %v653
        %686 = vmatpush.msra.mxu0 %v652
        %687 = vmatpush.msra.mxu0 %v651
        %688 = vmatpush.msra.mxu0 %v650
        %689 = vmatpush.msra.mxu0 %v649
        %690 = vmatpush.msra.mxu0 %v648
        %691 = vmatpush.msra.mxu0 %v647
        %692 = vmatpush.msra.mxu0 %v646
        %693 = vmatpush.msra.mxu0 %v645
        %694 = vmatpush.msra.mxu0 %v644
        %695 = vmatpush.msra.mxu0 %v643
        %696 = vmatpush.msra.mxu0 %v642
        %697 = vmatmul.f32.gmra.mxu0 %v231
        %v698 = vpop.f32.mrf.mxu0
        %v699 = vadd.f32 %v676, %v698
        %700 = vmatmul.f32.gmra.mxu0 %v623
        %v701 = vpop.f32.mrf.mxu0
        %v702 = vadd.f32 %v679, %v701
        %703 = vdwg.mxu0
        %v704 = vadd.f32 %v619, %v699
        %v705 = vadd.f32 %v620, %v702
        %706 = vst [vmem:[%s153] sm:$0xff] %v704
        %707 = vst [vmem:[%s153 + $0x8] sm:$0xff] %v705
        %v708 = vld [vmem:[%s153] sm:$0xff]
        %v709 = vld [vmem:[%s153 + $0x8] sm:$0xff]
        %s710 = scalar_lea.vmem [#allocation4], 1280
        %v711 = vld [vmem:[%s710] sm:$0xff]
        %v712 = vld [vmem:[%s710 + $0x8] sm:$0xff]
        %v713 = vld [vmem:[%s710 + $0x10] sm:$0xff]
        %v714 = vld [vmem:[%s710 + $0x18] sm:$0xff]
        %v715 = vld [vmem:[%s710 + $0x20] sm:$0xff]
        %v716 = vld [vmem:[%s710 + $0x28] sm:$0xff]
        %v717 = vld [vmem:[%s710 + $0x30] sm:$0xff]
        %v718 = vld [vmem:[%s710 + $0x38] sm:$0xff]
        %v719 = vld [vmem:[%s710 + $0x40] sm:$0xff]
        %v720 = vld [vmem:[%s710 + $0x48] sm:$0xff]
        %v721 = vld [vmem:[%s710 + $0x50] sm:$0xff]
        %v722 = vld [vmem:[%s710 + $0x58] sm:$0xff]
        %v723 = vld [vmem:[%s710 + $0x60] sm:$0xff]
        %v724 = vld [vmem:[%s710 + $0x68] sm:$0xff]
        %v725 = vld [vmem:[%s710 + $0x70] sm:$0xff]
        %v726 = vld [vmem:[%s710 + $0x78] sm:$0xff]
        %v727 = vld [vmem:[%s710 + $0x80] sm:$0xff]
        %v728 = vld [vmem:[%s710 + $0x88] sm:$0xff]
        %v729 = vld [vmem:[%s710 + $0x90] sm:$0xff]
        %v730 = vld [vmem:[%s710 + $0x98] sm:$0xff]
        %v731 = vld [vmem:[%s710 + $0xa0] sm:$0xff]
        %v732 = vld [vmem:[%s710 + $0xa8] sm:$0xff]
        %v733 = vld [vmem:[%s710 + $0xb0] sm:$0xff]
        %v734 = vld [vmem:[%s710 + $0xb8] sm:$0xff]
        %v735 = vld [vmem:[%s710 + $0xc0] sm:$0xff]
        %v736 = vld [vmem:[%s710 + $0xc8] sm:$0xff]
        %v737 = vld [vmem:[%s710 + $0xd0] sm:$0xff]
        %v738 = vld [vmem:[%s710 + $0xd8] sm:$0xff]
        %v739 = vld [vmem:[%s710 + $0xe0] sm:$0xff]
        %v740 = vld [vmem:[%s710 + $0xe8] sm:$0xff]
        %v741 = vld [vmem:[%s710 + $0xf0] sm:$0xff]
        %v742 = vld [vmem:[%s710 + $0xf8] sm:$0xff]
        %v743 = vrot.slane %v623, 2
        %v744 = vsel %vm354, %v359, %v743
        %v745 = vrot.slane %v221, 2
        %v746 = vsel %vm354, %v361, %v745
        %v747 = vrot.slane %v622, 2
        %v748 = vsel %vm354, %v743, %v747
        %752 = vmatpush.msra.mxu0 %v726
        %753 = vmatpush.msra.mxu0 %v725
        %754 = vmatpush.msra.mxu0 %v724
        %755 = vmatpush.msra.mxu0 %v723
        %756 = vmatpush.msra.mxu0 %v722
        %757 = vmatpush.msra.mxu0 %v721
        %758 = vmatpush.msra.mxu0 %v720
        %759 = vmatpush.msra.mxu0 %v719
        %760 = vmatpush.msra.mxu0 %v718
        %761 = vmatpush.msra.mxu0 %v717
        %762 = vmatpush.msra.mxu0 %v716
        %763 = vmatpush.msra.mxu0 %v715
        %764 = vmatpush.msra.mxu0 %v714
        %765 = vmatpush.msra.mxu0 %v713
        %766 = vmatpush.msra.mxu0 %v712
        %767 = vmatpush.msra.mxu0 %v711
        %768 = vmatmul.f32.gmra.mxu0 %v362
        %v769 = vpop.f32.mrf.mxu0
        %v770 = vadd.f32 0.0, %v769
        %771 = vmatmul.f32.gmra.mxu0 %v746
        %v772 = vpop.f32.mrf.mxu0
        %v773 = vadd.f32 0.0, %v772
        %774 = vdwg.mxu0
        %775 = vmatpush.msra.mxu0 %v742
        %776 = vmatpush.msra.mxu0 %v741
        %777 = vmatpush.msra.mxu0 %v740
        %778 = vmatpush.msra.mxu0 %v739
        %779 = vmatpush.msra.mxu0 %v738
        %780 = vmatpush.msra.mxu0 %v737
        %781 = vmatpush.msra.mxu0 %v736
        %782 = vmatpush.msra.mxu0 %v735
        %783 = vmatpush.msra.mxu0 %v734
        %784 = vmatpush.msra.mxu0 %v733
        %785 = vmatpush.msra.mxu0 %v732
        %786 = vmatpush.msra.mxu0 %v731
        %787 = vmatpush.msra.mxu0 %v730
        %788 = vmatpush.msra.mxu0 %v729
        %789 = vmatpush.msra.mxu0 %v728
        %790 = vmatpush.msra.mxu0 %v727
        %791 = vmatmul.f32.gmra.mxu0 %v744
        %v792 = vpop.f32.mrf.mxu0
        %v793 = vadd.f32 %v770, %v792
        %794 = vmatmul.f32.gmra.mxu0 %v748
        %v795 = vpop.f32.mrf.mxu0
        %v796 = vadd.f32 %v773, %v795
        %797 = vdwg.mxu0
        %v798 = vadd.f32 %v708, %v793
        %v799 = vadd.f32 %v709, %v796
        %800 = vst [vmem:[%s153] sm:$0xff] %v798
        %801 = vst [vmem:[%s153 + $0x8] sm:$0xff] %v799
        %s802 = sand.u32 %s82, 1
        %s803 = scalar_lea.sflag [#allocation6], %s802
        %s804 = sand.u32 %s82, 1
        %s805 = smul.addr %s804, 16
        %s806 = scalar_lea.vmem [#allocation7], %s805
        // Predicated region
        $region49: #{tpu_custom_call.1} parent=27 // pred_check
          %p807 = pneg %p92
        $region50: #{tpu_custom_call.1} parent=27 // pred_check_branch
          %809 = sbr.rel (%p807) target = $region52
        $region51: #{tpu_custom_call.1} parent=27 // pred_region
          %s810 = smul.u32 2, %s23
          %812 = vsyncadd %s803, 0
          %s813 = smul.addr %s22, 2
          %s814 = sadd.s32 %s810, %s813
          %s815 = smul.addr %s814, 8
          %s816 = scalar_lea.hbm %s3, %s815
          %s817 = sshll.u32 %s806, 4
          %s818 = int_to_ptr.vmem [resolvable:$true] %s817
          %s819 = sshll.u32 %s816, 4
          %s820 = int_to_ptr.hbm [resolvable:$true] %s819
          %825 = dma.vmem_to_hbm [thread:$0]  %s818, 256, %s820, %s803, 128, 128, 8
        $region52: #{tpu_custom_call.1} parent=27 // pred_fallthru
          _
      $region28: #{tpu_custom_call.1} parent=5 // pred_fallthru
        _
      %p826 = scmp.le.s32.totalorder 2, %s13
      // Predicated region
      $region53: #{tpu_custom_call.1} parent=5 // pred_check
        %p827 = pneg %p826
      $region54: #{tpu_custom_call.1} parent=5 // pred_check_branch
        %829 = sbr.rel (%p827) target = $region56
      $region55: #{tpu_custom_call.1} parent=5 // pred_region
        %s830 = ssub.s32 %s13, 2
        // Predicated region
        $region57: #{tpu_custom_call.1} parent=55 // pred_check
          %p831 = pneg %p98
        $region58: #{tpu_custom_call.1} parent=55 // pred_check_branch
          %833 = sbr.rel (%p831) target = $region60
        $region59: #{tpu_custom_call.1} parent=55 // pred_region
          %s834 = sand.u32 %s83, 1
          %s835 = scalar_lea.sflag [#allocation6], %s834
          %s836 = sand.u32 %s83, 1
          %s837 = smul.addr %s836, 16
          %s838 = scalar_lea.vmem [#allocation7], %s837
          %840 = dma.done %s835, 256
        $region60: #{tpu_custom_call.1} parent=55 // pred_fallthru
          _
      $region56: #{tpu_custom_call.1} parent=5 // pred_fallthru
        _
    $region6: #{tpu_custom_call.1} parent=1 // loop_footer
      %s17 = sadd.s32 1, %s13
    $region7: #{tpu_custom_call.1} parent=1 // loop_footer_branch
      %12 = sbr.rel target = $region3
    $region8: #{tpu_custom_call.1} parent=1 // loop_exit
      _
    %841 = vsyncpa [#allocation5], 1
    %s842 = scalar_lea.sflag [#allocation5], 1
    %843 = vsyncpa %s842, 1
    %844 = vsyncpa [#allocation6], 1
    %s845 = scalar_lea.sflag [#allocation6], 1
    %846 = vsyncpa %s845, 1
  %847 = vsyncmov [#allocation3]
  %s848 = vpop.sfrf %847
  %p849 = scmp.eq.s32.totalorder %s848, 0
  %p850 = pneg %p849
  %852 = shalt.err (%p850)
  %s853 = scalar_lea.sflag [#allocation3], 1
  %854 = vsyncmov %s853
  %s855 = vpop.sfrf %854
  %p856 = scmp.eq.s32.totalorder %s855, 0
  %p857 = pneg %p856
  %859 = shalt.err (%p857)

</llo_original>
